<compile_context>
chip_gen: v7x
topology: tpu7x:2x2x1
jax: 0.10.0
libtpu: 0.0.40
codegen_flags: <defaults>
</compile_context>

<pallas_src>
import functools

import jax
import jax.numpy as jnp
import numpy as np
from jax import lax
from jax.experimental import pallas as pl
from jax.experimental.pallas import tpu as pltpu


# ----------------------------- fused attention + projection kernel -----------------------------
def _fused_mhsa_kernel(x_ref, wqkv_ref, wp_ref, bp_ref, o_ref, cat_ref, *,
                       num_heads, head_size, block_b, seq_len, compute_dtype):
    # x_ref    : (bb, T, C)        one stream, bb batch elements (leading stream dim squeezed)
    # wqkv_ref : (C, 3*H*hs)       fused Q|K|V weights, head h at columns [h*hs, (h+1)*hs)
    # wp_ref   : (H*hs, C)         output projection
    # bp_ref   : (1, C)            projection bias (f32)
    # o_ref    : (bb, T, C)        lane-dense output
    # cat_ref  : VMEM scratch (bb*T, H*hs), compute dtype
    Hhs = num_heads * head_size
    C = x_ref.shape[-1]
    rows = block_b * seq_len

    x = x_ref[...].reshape(rows, C)                                   # (bb*T, C)
    wqkv = wqkv_ref[...]                                              # (C, 3*Hhs)

    # One fused QKV matmul (f32 accumulation). q is pre-scaled by hs**-0.5 so the
    # (T, T) score matrix needs no extra multiply.
    qkv = jnp.dot(x, wqkv, preferred_element_type=jnp.float32)        # (bb*T, 3*Hhs) f32
    scale = head_size ** -0.5
    q = (qkv[:, :Hhs] * scale).astype(compute_dtype)                  # MXU inputs in compute dtype
    k = qkv[:, Hhs:2 * Hhs].astype(compute_dtype)
    v = qkv[:, 2 * Hhs:].astype(compute_dtype)

    for b in range(block_b):                       # static unroll; everything stays in VMEM/vregs
        r0 = b * seq_len
        for h in range(num_heads):
            lo = h * head_size
            qh = q[r0:r0 + seq_len, lo:lo + head_size]                # (T, hs)
            kh = k[r0:r0 + seq_len, lo:lo + head_size]
            vh = v[r0:r0 + seq_len, lo:lo + head_size]

            # Contract on hs without materializing kh.T (no XLU transpose); f32 accumulation.
            att = lax.dot_general(qh, kh, (((1,), (1,)), ((), ())),
                                  preferred_element_type=jnp.float32)  # (T, T) f32
            att = jnp.exp(att - jnp.max(att, axis=-1, keepdims=True))
            # Deferred normalization: keep att unnormalized, scale the (T, hs) PV result.
            inv = pl.reciprocal(jnp.sum(att, axis=-1, keepdims=True), approx=True)  # EUP
            # TODO(synk): attention-dropout would be applied here (identity in eval mode).
            pv = jnp.dot(att.astype(compute_dtype), vh,
                         preferred_element_type=jnp.float32)           # (T, hs) f32
            cat_ref[r0:r0 + seq_len, lo:lo + head_size] = (pv * inv).astype(cat_ref.dtype)

    # Fused output projection + bias; lane-dense (bb*T, C) result, one store.
    y = jnp.dot(cat_ref[...], wp_ref[...], preferred_element_type=jnp.float32) + bp_ref[...]
    o_ref[...] = y.reshape(block_b, seq_len, C).astype(o_ref.dtype)


# ----------------------------- one-time weight packing -----------------------------
def prepare_params(params, compute_dtype=None):
    """Pack per-head weights into fused, pre-cast kernel operands (call once, reuse)."""
    wq, wk, wv = params["wq"], params["wk"], params["wv"]              # (2, H, C, hs)
    wp, bp = params["wp"], params["bp"]                                # (2, H*hs, C), (2, C)
    S, H, C, hs = wq.shape
    Hhs = H * hs
    dt = compute_dtype if compute_dtype is not None else wq.dtype

    def fuse(w):  # (S, H, C, hs) -> (S, C, H*hs); column block h*hs:(h+1)*hs == head h
        return jnp.transpose(w, (0, 2, 1, 3)).reshape(S, C, Hhs)

    wqkv = jnp.concatenate([fuse(wq), fuse(wk), fuse(wv)], axis=-1).astype(dt)  # (S, C, 3*Hhs)
    return {
        "wqkv": wqkv,
        "wp": wp.astype(dt),                                           # (S, Hhs, C)
        "bp": bp.reshape(S, 1, C).astype(jnp.float32),                 # bias stays f32
        "num_heads": H,
        "head_size": hs,
        "compute_dtype": jnp.dtype(dt),
    }


# ----------------------------- wrapper -----------------------------
def multi_head_sa_attention(x_head, x_body, prepped):
    """Pallas implementation of MultiHeadSAAttention.forward (dropout = identity).

    x_head, x_body : (B, T, C)
    prepped        : output of prepare_params()
    """
    B, T, C = x_head.shape
    H, hs = prepped["num_heads"], prepped["head_size"]
    Hhs = H * hs
    dt = prepped["compute_dtype"]
    S = 2

    # Fold batch into the block when the working set is small (kills per-step overhead and
    # raises the MXU M-dim); otherwise one batch element per step.
    block_b = B if B * T <= 256 else 1
    nb = B // block_b

    x = jnp.stack([x_head, x_body], axis=0).astype(dt)                 # (2, B, T, C)

    dt_bytes = jnp.dtype(dt).itemsize
    out_bytes = jnp.dtype(x_head.dtype).itemsize
    # Per-step VMEM working set (double-buffered tiles + f32 intermediates), with headroom.
    est = (2 * block_b * T * C * (dt_bytes + out_bytes)
           + 2 * (C * 3 * Hhs + Hhs * C) * dt_bytes + 2 * C * 4
           + block_b * T * 3 * Hhs * 4 + T * T * 4 + block_b * T * Hhs * dt_bytes)
    vmem_limit = int(min(100 * 1024 * 1024, max(32 * 1024 * 1024, 2 * est)))

    flops = (2 * S * B * T * C * 3 * Hhs            # fused QKV
             + 2 * S * B * H * T * T * hs * 2       # QK^T + PV
             + 2 * S * B * T * Hhs * C)             # output projection
    bytes_accessed = (S * B * T * C * dt_bytes
                      + S * (C * 3 * Hhs + Hhs * C) * dt_bytes + S * C * 4
                      + S * B * T * C * out_bytes)

    out = pl.pallas_call(
        functools.partial(_fused_mhsa_kernel, num_heads=H, head_size=hs,
                          block_b=block_b, seq_len=T, compute_dtype=dt),
        out_shape=jax.ShapeDtypeStruct((S, B, T, C), x_head.dtype),
        grid_spec=pltpu.PrefetchScalarGridSpec(
            num_scalar_prefetch=0,
            grid=(S, nb),
            in_specs=[
                pl.BlockSpec((None, block_b, T, C), lambda s, b: (s, b, 0, 0)),
                # Weight block indices are constant along the batch axis -> no re-DMA.
                pl.BlockSpec((None, C, 3 * Hhs), lambda s, b: (s, 0, 0)),
                pl.BlockSpec((None, Hhs, C), lambda s, b: (s, 0, 0)),
                pl.BlockSpec((None, 1, C), lambda s, b: (s, 0, 0)),
            ],
            out_specs=pl.BlockSpec((None, block_b, T, C), lambda s, b: (s, b, 0, 0)),
            scratch_shapes=[pltpu.VMEM((block_b * T, Hhs), dt)],
        ),
        compiler_params=pltpu.CompilerParams(
            dimension_semantics=("parallel", "parallel"),
            vmem_limit_bytes=vmem_limit,
        ),
        cost_estimate=pl.CostEstimate(flops=flops,
                                      transcendentals=S * B * H * T * T,
                                      bytes_accessed=bytes_accessed),
    )(x, prepped["wqkv"], prepped["wp"], prepped["bp"])

    return out[0], out[1]


# ----------------------------- pure-JAX reference -----------------------------
def reference_forward(x_head, x_body, params):
    wq, wk, wv = params["wq"], params["wk"], params["wv"]
    wp, bp = params["wp"], params["bp"]
    hs = wq.shape[-1]
    outs = []
    for s, x in enumerate([x_head, x_body]):
        head_outs = []
        for h in range(wq.shape[1]):
            q = x @ wq[s, h]
            k = x @ wk[s, h]
            v = x @ wv[s, h]
            att = (q @ jnp.swapaxes(k, -2, -1)) * hs ** -0.5
            att = jax.nn.softmax(att, axis=-1)
            head_outs.append(att @ v)
        cat = jnp.concatenate(head_outs, axis=-1)
        outs.append(cat @ wp[s] + bp[s])
    return outs[0], outs[1]


# ----------------------------- params -----------------------------
def init_params(key, n_embd, num_heads, head_size):
    keys = jax.random.split(key, 5)
    scale = 0.02
    wq = scale * jax.random.normal(keys[0], (2, num_heads, n_embd, head_size), jnp.float32)
    wk = scale * jax.random.normal(keys[1], (2, num_heads, n_embd, head_size), jnp.float32)
    wv = scale * jax.random.normal(keys[2], (2, num_heads, n_embd, head_size), jnp.float32)
    wp = scale * jax.random.normal(keys[3], (2, num_heads * head_size, n_embd), jnp.float32)
    bp = scale * jax.random.normal(keys[4], (2, n_embd), jnp.float32)
    return {"wq": wq, "wk": wk, "wv": wv, "wp": wp, "bp": bp}


if __name__ == "__main__":
    B, T, n_embd = 2, 8, 32
    num_heads, head_size = 4, 8

    key = jax.random.PRNGKey(0)
    k_params, k_xh, k_xb = jax.random.split(key, 3)
    params = init_params(k_params, n_embd, num_heads, head_size)

    x_head = jax.random.normal(k_xh, (B, T, n_embd), jnp.float32)
    x_body = jax.random.normal(k_xb, (B, T, n_embd), jnp.float32)

    ref_head, ref_body = reference_forward(x_head, x_body, params)

    # f32 MXU-input path (approx reciprocal on EUP -> not bitwise, but tight).
    prepped_f32 = prepare_params(params)
    out_head, out_body = multi_head_sa_attention(x_head, x_body, prepped_f32)
    jax.block_until_ready((out_head, out_body))
    np.testing.assert_allclose(np.asarray(out_head), np.asarray(ref_head), atol=1e-3, rtol=1e-2)
    np.testing.assert_allclose(np.asarray(out_body), np.asarray(ref_body), atol=1e-3, rtol=1e-2)

    # bf16 MXU-input path (all four matmuls fed bf16, f32 accumulation / softmax).
    prepped_bf16 = prepare_params(params, compute_dtype=jnp.bfloat16)
    out_head_bf, out_body_bf = multi_head_sa_attention(x_head, x_body, prepped_bf16)
    jax.block_until_ready((out_head_bf, out_body_bf))
    np.testing.assert_allclose(np.asarray(out_head_bf), np.asarray(ref_head), atol=3e-2, rtol=3e-2)
    np.testing.assert_allclose(np.asarray(out_body_bf), np.asarray(ref_body), atol=3e-2, rtol=3e-2)

    print("KERNEL_OK")
</pallas_src>

<mosaic_0001>
module attributes {stable_mosaic.version = 11 : i64} {
  func.func @_fused_mhsa_kernel(%arg0: i32, %arg1: i32, %arg2: memref<1x2x8x32xf32, #tpu.memory_space<vmem>>, %arg3: memref<1x32x96xf32, #tpu.memory_space<vmem>>, %arg4: memref<1x32x32xf32, #tpu.memory_space<vmem>>, %arg5: memref<1x1x32xf32, #tpu.memory_space<vmem>>, %arg6: memref<1x2x8x32xf32, #tpu.memory_space<vmem>>, %arg7: memref<16x32xf32, #tpu.memory_space<vmem>>) attributes {dimension_semantics = [#tpu.dimension_semantics<parallel>, #tpu.dimension_semantics<parallel>], iteration_bounds = array<i64: 2, 1>, scalar_prefetch = 0 : i64, scratch_operands = 1 : i64, tpu.core_type = #tpu.core_type<tc>, window_params = [{transform_indices = @transform_0, window_bounds = array<i64: 1, 2, 8, 32>}, {transform_indices = @transform_1, window_bounds = array<i64: 1, 32, 96>}, {transform_indices = @transform_2, window_bounds = array<i64: 1, 32, 32>}, {transform_indices = @transform_3, window_bounds = array<i64: 1, 1, 32>}, {transform_indices = @transform_4, window_bounds = array<i64: 1, 2, 8, 32>}]} {
    %c0 = arith.constant 0 : index
    %c0_0 = arith.constant 0 : index
    %c0_1 = arith.constant 0 : index
    %c0_2 = arith.constant 0 : index
    %0 = vector.load %arg2[%c0, %c0_0, %c0_1, %c0_2] : memref<1x2x8x32xf32, #tpu.memory_space<vmem>>, vector<1x2x8x32xf32>
    %1 = vector.shape_cast %0 : vector<1x2x8x32xf32> to vector<2x8x32xf32>
    %2 = vector.shape_cast %1 : vector<2x8x32xf32> to vector<16x32xf32>
    %c0_3 = arith.constant 0 : index
    %c0_4 = arith.constant 0 : index
    %c0_5 = arith.constant 0 : index
    %3 = vector.load %arg3[%c0_3, %c0_4, %c0_5] : memref<1x32x96xf32, #tpu.memory_space<vmem>>, vector<1x32x96xf32>
    %4 = vector.shape_cast %3 : vector<1x32x96xf32> to vector<32x96xf32>
    %cst = arith.constant dense<0.000000e+00> : vector<16x96xf32>
    %5 = tpu.matmul %2, %4, %cst {dimension_numbers = #tpu.dot_dimension_numbers<[1], [0], [0], [1], [0, 0, 1, 1], [], []>} : vector<16x32xf32>, vector<32x96xf32>, vector<16x96xf32> -> vector<16x96xf32>
    %6 = vector.extract_strided_slice %5 {offsets = [0, 0], sizes = [16, 32], strides = [1, 1]} : vector<16x96xf32> to vector<16x32xf32>
    %cst_6 = arith.constant 0.353553385 : f32
    %7 = vector.broadcast %cst_6 : f32 to vector<16x32xf32>
    %8 = arith.mulf %6, %7 : vector<16x32xf32>
    %9 = vector.extract_strided_slice %5 {offsets = [0, 32], sizes = [16, 32], strides = [1, 1]} : vector<16x96xf32> to vector<16x32xf32>
    %10 = vector.extract_strided_slice %5 {offsets = [0, 64], sizes = [16, 32], strides = [1, 1]} : vector<16x96xf32> to vector<16x32xf32>
    %11 = vector.extract_strided_slice %8 {offsets = [0, 0], sizes = [8, 8], strides = [1, 1]} : vector<16x32xf32> to vector<8x8xf32>
    %12 = vector.extract_strided_slice %9 {offsets = [0, 0], sizes = [8, 8], strides = [1, 1]} : vector<16x32xf32> to vector<8x8xf32>
    %13 = vector.extract_strided_slice %10 {offsets = [0, 0], sizes = [8, 8], strides = [1, 1]} : vector<16x32xf32> to vector<8x8xf32>
    %cst_7 = arith.constant dense<0.000000e+00> : vector<8x8xf32>
    %14 = tpu.matmul %11, %12, %cst_7 {dimension_numbers = #tpu.dot_dimension_numbers<[1], [1], [0], [0], [0, 0, 1, 0], [], []>} : vector<8x8xf32>, vector<8x8xf32>, vector<8x8xf32> -> vector<8x8xf32>
    %cst_8 = arith.constant dense<0xFF800000> : vector<8xf32>
    %15 = vector.multi_reduction <maximumf>, %14, %cst_8 [1] : vector<8x8xf32> to vector<8xf32>
    %16 = vector.shape_cast %15 : vector<8xf32> to vector<8x1xf32>
    %17 = vector.broadcast %16 : vector<8x1xf32> to vector<8x8xf32>
    %18 = arith.subf %14, %17 : vector<8x8xf32>
    %19 = math.exp %18 : vector<8x8xf32>
    %cst_9 = arith.constant dense<0.000000e+00> : vector<8xf32>
    %20 = vector.multi_reduction <add>, %19, %cst_9 [1] : vector<8x8xf32> to vector<8xf32>
    %21 = vector.shape_cast %20 : vector<8xf32> to vector<8x1xf32>
    %22 = tpu.reciprocal %21 {approx = true} : vector<8x1xf32> -> vector<8x1xf32>
    %cst_10 = arith.constant dense<0.000000e+00> : vector<8x8xf32>
    %23 = tpu.matmul %19, %13, %cst_10 {dimension_numbers = #tpu.dot_dimension_numbers<[1], [0], [0], [1], [0, 0, 1, 1], [], []>} : vector<8x8xf32>, vector<8x8xf32>, vector<8x8xf32> -> vector<8x8xf32>
    %24 = vector.broadcast %22 : vector<8x1xf32> to vector<8x8xf32>
    %25 = arith.mulf %23, %24 : vector<8x8xf32>
    %c0_11 = arith.constant 0 : index
    %c0_12 = arith.constant 0 : index
    %26 = vector.load %arg7[%c0_11, %c0_12] : memref<16x32xf32, #tpu.memory_space<vmem>>, vector<8x8xf32>
    tpu.vector_store %arg7[%c0_11, %c0_12], %25 {strides = array<i32>} : memref<16x32xf32, #tpu.memory_space<vmem>>, vector<8x8xf32>,
    %27 = vector.extract_strided_slice %8 {offsets = [0, 8], sizes = [8, 8], strides = [1, 1]} : vector<16x32xf32> to vector<8x8xf32>
    %28 = vector.extract_strided_slice %9 {offsets = [0, 8], sizes = [8, 8], strides = [1, 1]} : vector<16x32xf32> to vector<8x8xf32>
    %29 = vector.extract_strided_slice %10 {offsets = [0, 8], sizes = [8, 8], strides = [1, 1]} : vector<16x32xf32> to vector<8x8xf32>
    %cst_13 = arith.constant dense<0.000000e+00> : vector<8x8xf32>
    %30 = tpu.matmul %27, %28, %cst_13 {dimension_numbers = #tpu.dot_dimension_numbers<[1], [1], [0], [0], [0, 0, 1, 0], [], []>} : vector<8x8xf32>, vector<8x8xf32>, vector<8x8xf32> -> vector<8x8xf32>
    %cst_14 = arith.constant dense<0xFF800000> : vector<8xf32>
    %31 = vector.multi_reduction <maximumf>, %30, %cst_14 [1] : vector<8x8xf32> to vector<8xf32>
    %32 = vector.shape_cast %31 : vector<8xf32> to vector<8x1xf32>
    %33 = vector.broadcast %32 : vector<8x1xf32> to vector<8x8xf32>
    %34 = arith.subf %30, %33 : vector<8x8xf32>
    %35 = math.exp %34 : vector<8x8xf32>
    %cst_15 = arith.constant dense<0.000000e+00> : vector<8xf32>
    %36 = vector.multi_reduction <add>, %35, %cst_15 [1] : vector<8x8xf32> to vector<8xf32>
    %37 = vector.shape_cast %36 : vector<8xf32> to vector<8x1xf32>
    %38 = tpu.reciprocal %37 {approx = true} : vector<8x1xf32> -> vector<8x1xf32>
    %cst_16 = arith.constant dense<0.000000e+00> : vector<8x8xf32>
    %39 = tpu.matmul %35, %29, %cst_16 {dimension_numbers = #tpu.dot_dimension_numbers<[1], [0], [0], [1], [0, 0, 1, 1], [], []>} : vector<8x8xf32>, vector<8x8xf32>, vector<8x8xf32> -> vector<8x8xf32>
    %40 = vector.broadcast %38 : vector<8x1xf32> to vector<8x8xf32>
    %41 = arith.mulf %39, %40 : vector<8x8xf32>
    %c0_17 = arith.constant 0 : index
    %c8 = arith.constant 8 : index
    %42 = vector.load %arg7[%c0_17, %c8] : memref<16x32xf32, #tpu.memory_space<vmem>>, vector<8x8xf32>
    tpu.vector_store %arg7[%c0_17, %c8], %41 {strides = array<i32>} : memref<16x32xf32, #tpu.memory_space<vmem>>, vector<8x8xf32>,
    %43 = vector.extract_strided_slice %8 {offsets = [0, 16], sizes = [8, 8], strides = [1, 1]} : vector<16x32xf32> to vector<8x8xf32>
    %44 = vector.extract_strided_slice %9 {offsets = [0, 16], sizes = [8, 8], strides = [1, 1]} : vector<16x32xf32> to vector<8x8xf32>
    %45 = vector.extract_strided_slice %10 {offsets = [0, 16], sizes = [8, 8], strides = [1, 1]} : vector<16x32xf32> to vector<8x8xf32>
    %cst_18 = arith.constant dense<0.000000e+00> : vector<8x8xf32>
    %46 = tpu.matmul %43, %44, %cst_18 {dimension_numbers = #tpu.dot_dimension_numbers<[1], [1], [0], [0], [0, 0, 1, 0], [], []>} : vector<8x8xf32>, vector<8x8xf32>, vector<8x8xf32> -> vector<8x8xf32>
    %cst_19 = arith.constant dense<0xFF800000> : vector<8xf32>
    %47 = vector.multi_reduction <maximumf>, %46, %cst_19 [1] : vector<8x8xf32> to vector<8xf32>
    %48 = vector.shape_cast %47 : vector<8xf32> to vector<8x1xf32>
    %49 = vector.broadcast %48 : vector<8x1xf32> to vector<8x8xf32>
    %50 = arith.subf %46, %49 : vector<8x8xf32>
    %51 = math.exp %50 : vector<8x8xf32>
    %cst_20 = arith.constant dense<0.000000e+00> : vector<8xf32>
    %52 = vector.multi_reduction <add>, %51, %cst_20 [1] : vector<8x8xf32> to vector<8xf32>
    %53 = vector.shape_cast %52 : vector<8xf32> to vector<8x1xf32>
    %54 = tpu.reciprocal %53 {approx = true} : vector<8x1xf32> -> vector<8x1xf32>
    %cst_21 = arith.constant dense<0.000000e+00> : vector<8x8xf32>
    %55 = tpu.matmul %51, %45, %cst_21 {dimension_numbers = #tpu.dot_dimension_numbers<[1], [0], [0], [1], [0, 0, 1, 1], [], []>} : vector<8x8xf32>, vector<8x8xf32>, vector<8x8xf32> -> vector<8x8xf32>
    %56 = vector.broadcast %54 : vector<8x1xf32> to vector<8x8xf32>
    %57 = arith.mulf %55, %56 : vector<8x8xf32>
    %c0_22 = arith.constant 0 : index
    %c16 = arith.constant 16 : index
    %58 = vector.load %arg7[%c0_22, %c16] : memref<16x32xf32, #tpu.memory_space<vmem>>, vector<8x8xf32>
    tpu.vector_store %arg7[%c0_22, %c16], %57 {strides = array<i32>} : memref<16x32xf32, #tpu.memory_space<vmem>>, vector<8x8xf32>,
    %59 = vector.extract_strided_slice %8 {offsets = [0, 24], sizes = [8, 8], strides = [1, 1]} : vector<16x32xf32> to vector<8x8xf32>
    %60 = vector.extract_strided_slice %9 {offsets = [0, 24], sizes = [8, 8], strides = [1, 1]} : vector<16x32xf32> to vector<8x8xf32>
    %61 = vector.extract_strided_slice %10 {offsets = [0, 24], sizes = [8, 8], strides = [1, 1]} : vector<16x32xf32> to vector<8x8xf32>
    %cst_23 = arith.constant dense<0.000000e+00> : vector<8x8xf32>
    %62 = tpu.matmul %59, %60, %cst_23 {dimension_numbers = #tpu.dot_dimension_numbers<[1], [1], [0], [0], [0, 0, 1, 0], [], []>} : vector<8x8xf32>, vector<8x8xf32>, vector<8x8xf32> -> vector<8x8xf32>
    %cst_24 = arith.constant dense<0xFF800000> : vector<8xf32>
    %63 = vector.multi_reduction <maximumf>, %62, %cst_24 [1] : vector<8x8xf32> to vector<8xf32>
    %64 = vector.shape_cast %63 : vector<8xf32> to vector<8x1xf32>
    %65 = vector.broadcast %64 : vector<8x1xf32> to vector<8x8xf32>
    %66 = arith.subf %62, %65 : vector<8x8xf32>
    %67 = math.exp %66 : vector<8x8xf32>
    %cst_25 = arith.constant dense<0.000000e+00> : vector<8xf32>
    %68 = vector.multi_reduction <add>, %67, %cst_25 [1] : vector<8x8xf32> to vector<8xf32>
    %69 = vector.shape_cast %68 : vector<8xf32> to vector<8x1xf32>
    %70 = tpu.reciprocal %69 {approx = true} : vector<8x1xf32> -> vector<8x1xf32>
    %cst_26 = arith.constant dense<0.000000e+00> : vector<8x8xf32>
    %71 = tpu.matmul %67, %61, %cst_26 {dimension_numbers = #tpu.dot_dimension_numbers<[1], [0], [0], [1], [0, 0, 1, 1], [], []>} : vector<8x8xf32>, vector<8x8xf32>, vector<8x8xf32> -> vector<8x8xf32>
    %72 = vector.broadcast %70 : vector<8x1xf32> to vector<8x8xf32>
    %73 = arith.mulf %71, %72 : vector<8x8xf32>
    %c0_27 = arith.constant 0 : index
    %c24 = arith.constant 24 : index
    %74 = vector.load %arg7[%c0_27, %c24] : memref<16x32xf32, #tpu.memory_space<vmem>>, vector<8x8xf32>
    tpu.vector_store %arg7[%c0_27, %c24], %73 {strides = array<i32>} : memref<16x32xf32, #tpu.memory_space<vmem>>, vector<8x8xf32>,
    %75 = vector.extract_strided_slice %8 {offsets = [8, 0], sizes = [8, 8], strides = [1, 1]} : vector<16x32xf32> to vector<8x8xf32>
    %76 = vector.extract_strided_slice %9 {offsets = [8, 0], sizes = [8, 8], strides = [1, 1]} : vector<16x32xf32> to vector<8x8xf32>
    %77 = vector.extract_strided_slice %10 {offsets = [8, 0], sizes = [8, 8], strides = [1, 1]} : vector<16x32xf32> to vector<8x8xf32>
    %cst_28 = arith.constant dense<0.000000e+00> : vector<8x8xf32>
    %78 = tpu.matmul %75, %76, %cst_28 {dimension_numbers = #tpu.dot_dimension_numbers<[1], [1], [0], [0], [0, 0, 1, 0], [], []>} : vector<8x8xf32>, vector<8x8xf32>, vector<8x8xf32> -> vector<8x8xf32>
    %cst_29 = arith.constant dense<0xFF800000> : vector<8xf32>
    %79 = vector.multi_reduction <maximumf>, %78, %cst_29 [1] : vector<8x8xf32> to vector<8xf32>
    %80 = vector.shape_cast %79 : vector<8xf32> to vector<8x1xf32>
    %81 = vector.broadcast %80 : vector<8x1xf32> to vector<8x8xf32>
    %82 = arith.subf %78, %81 : vector<8x8xf32>
    %83 = math.exp %82 : vector<8x8xf32>
    %cst_30 = arith.constant dense<0.000000e+00> : vector<8xf32>
    %84 = vector.multi_reduction <add>, %83, %cst_30 [1] : vector<8x8xf32> to vector<8xf32>
    %85 = vector.shape_cast %84 : vector<8xf32> to vector<8x1xf32>
    %86 = tpu.reciprocal %85 {approx = true} : vector<8x1xf32> -> vector<8x1xf32>
    %cst_31 = arith.constant dense<0.000000e+00> : vector<8x8xf32>
    %87 = tpu.matmul %83, %77, %cst_31 {dimension_numbers = #tpu.dot_dimension_numbers<[1], [0], [0], [1], [0, 0, 1, 1], [], []>} : vector<8x8xf32>, vector<8x8xf32>, vector<8x8xf32> -> vector<8x8xf32>
    %88 = vector.broadcast %86 : vector<8x1xf32> to vector<8x8xf32>
    %89 = arith.mulf %87, %88 : vector<8x8xf32>
    %c8_32 = arith.constant 8 : index
    %c0_33 = arith.constant 0 : index
    %90 = vector.load %arg7[%c8_32, %c0_33] : memref<16x32xf32, #tpu.memory_space<vmem>>, vector<8x8xf32>
    tpu.vector_store %arg7[%c8_32, %c0_33], %89 {strides = array<i32>} : memref<16x32xf32, #tpu.memory_space<vmem>>, vector<8x8xf32>,
    %91 = vector.extract_strided_slice %8 {offsets = [8, 8], sizes = [8, 8], strides = [1, 1]} : vector<16x32xf32> to vector<8x8xf32>
    %92 = vector.extract_strided_slice %9 {offsets = [8, 8], sizes = [8, 8], strides = [1, 1]} : vector<16x32xf32> to vector<8x8xf32>
    %93 = vector.extract_strided_slice %10 {offsets = [8, 8], sizes = [8, 8], strides = [1, 1]} : vector<16x32xf32> to vector<8x8xf32>
    %cst_34 = arith.constant dense<0.000000e+00> : vector<8x8xf32>
    %94 = tpu.matmul %91, %92, %cst_34 {dimension_numbers = #tpu.dot_dimension_numbers<[1], [1], [0], [0], [0, 0, 1, 0], [], []>} : vector<8x8xf32>, vector<8x8xf32>, vector<8x8xf32> -> vector<8x8xf32>
    %cst_35 = arith.constant dense<0xFF800000> : vector<8xf32>
    %95 = vector.multi_reduction <maximumf>, %94, %cst_35 [1] : vector<8x8xf32> to vector<8xf32>
    %96 = vector.shape_cast %95 : vector<8xf32> to vector<8x1xf32>
    %97 = vector.broadcast %96 : vector<8x1xf32> to vector<8x8xf32>
    %98 = arith.subf %94, %97 : vector<8x8xf32>
    %99 = math.exp %98 : vector<8x8xf32>
    %cst_36 = arith.constant dense<0.000000e+00> : vector<8xf32>
    %100 = vector.multi_reduction <add>, %99, %cst_36 [1] : vector<8x8xf32> to vector<8xf32>
    %101 = vector.shape_cast %100 : vector<8xf32> to vector<8x1xf32>
    %102 = tpu.reciprocal %101 {approx = true} : vector<8x1xf32> -> vector<8x1xf32>
    %cst_37 = arith.constant dense<0.000000e+00> : vector<8x8xf32>
    %103 = tpu.matmul %99, %93, %cst_37 {dimension_numbers = #tpu.dot_dimension_numbers<[1], [0], [0], [1], [0, 0, 1, 1], [], []>} : vector<8x8xf32>, vector<8x8xf32>, vector<8x8xf32> -> vector<8x8xf32>
    %104 = vector.broadcast %102 : vector<8x1xf32> to vector<8x8xf32>
    %105 = arith.mulf %103, %104 : vector<8x8xf32>
    %c8_38 = arith.constant 8 : index
    %c8_39 = arith.constant 8 : index
    %106 = vector.load %arg7[%c8_38, %c8_39] : memref<16x32xf32, #tpu.memory_space<vmem>>, vector<8x8xf32>
    tpu.vector_store %arg7[%c8_38, %c8_39], %105 {strides = array<i32>} : memref<16x32xf32, #tpu.memory_space<vmem>>, vector<8x8xf32>,
    %107 = vector.extract_strided_slice %8 {offsets = [8, 16], sizes = [8, 8], strides = [1, 1]} : vector<16x32xf32> to vector<8x8xf32>
    %108 = vector.extract_strided_slice %9 {offsets = [8, 16], sizes = [8, 8], strides = [1, 1]} : vector<16x32xf32> to vector<8x8xf32>
    %109 = vector.extract_strided_slice %10 {offsets = [8, 16], sizes = [8, 8], strides = [1, 1]} : vector<16x32xf32> to vector<8x8xf32>
    %cst_40 = arith.constant dense<0.000000e+00> : vector<8x8xf32>
    %110 = tpu.matmul %107, %108, %cst_40 {dimension_numbers = #tpu.dot_dimension_numbers<[1], [1], [0], [0], [0, 0, 1, 0], [], []>} : vector<8x8xf32>, vector<8x8xf32>, vector<8x8xf32> -> vector<8x8xf32>
    %cst_41 = arith.constant dense<0xFF800000> : vector<8xf32>
    %111 = vector.multi_reduction <maximumf>, %110, %cst_41 [1] : vector<8x8xf32> to vector<8xf32>
    %112 = vector.shape_cast %111 : vector<8xf32> to vector<8x1xf32>
    %113 = vector.broadcast %112 : vector<8x1xf32> to vector<8x8xf32>
    %114 = arith.subf %110, %113 : vector<8x8xf32>
    %115 = math.exp %114 : vector<8x8xf32>
    %cst_42 = arith.constant dense<0.000000e+00> : vector<8xf32>
    %116 = vector.multi_reduction <add>, %115, %cst_42 [1] : vector<8x8xf32> to vector<8xf32>
    %117 = vector.shape_cast %116 : vector<8xf32> to vector<8x1xf32>
    %118 = tpu.reciprocal %117 {approx = true} : vector<8x1xf32> -> vector<8x1xf32>
    %cst_43 = arith.constant dense<0.000000e+00> : vector<8x8xf32>
    %119 = tpu.matmul %115, %109, %cst_43 {dimension_numbers = #tpu.dot_dimension_numbers<[1], [0], [0], [1], [0, 0, 1, 1], [], []>} : vector<8x8xf32>, vector<8x8xf32>, vector<8x8xf32> -> vector<8x8xf32>
    %120 = vector.broadcast %118 : vector<8x1xf32> to vector<8x8xf32>
    %121 = arith.mulf %119, %120 : vector<8x8xf32>
    %c8_44 = arith.constant 8 : index
    %c16_45 = arith.constant 16 : index
    %122 = vector.load %arg7[%c8_44, %c16_45] : memref<16x32xf32, #tpu.memory_space<vmem>>, vector<8x8xf32>
    tpu.vector_store %arg7[%c8_44, %c16_45], %121 {strides = array<i32>} : memref<16x32xf32, #tpu.memory_space<vmem>>, vector<8x8xf32>,
    %123 = vector.extract_strided_slice %8 {offsets = [8, 24], sizes = [8, 8], strides = [1, 1]} : vector<16x32xf32> to vector<8x8xf32>
    %124 = vector.extract_strided_slice %9 {offsets = [8, 24], sizes = [8, 8], strides = [1, 1]} : vector<16x32xf32> to vector<8x8xf32>
    %125 = vector.extract_strided_slice %10 {offsets = [8, 24], sizes = [8, 8], strides = [1, 1]} : vector<16x32xf32> to vector<8x8xf32>
    %cst_46 = arith.constant dense<0.000000e+00> : vector<8x8xf32>
    %126 = tpu.matmul %123, %124, %cst_46 {dimension_numbers = #tpu.dot_dimension_numbers<[1], [1], [0], [0], [0, 0, 1, 0], [], []>} : vector<8x8xf32>, vector<8x8xf32>, vector<8x8xf32> -> vector<8x8xf32>
    %cst_47 = arith.constant dense<0xFF800000> : vector<8xf32>
    %127 = vector.multi_reduction <maximumf>, %126, %cst_47 [1] : vector<8x8xf32> to vector<8xf32>
    %128 = vector.shape_cast %127 : vector<8xf32> to vector<8x1xf32>
    %129 = vector.broadcast %128 : vector<8x1xf32> to vector<8x8xf32>
    %130 = arith.subf %126, %129 : vector<8x8xf32>
    %131 = math.exp %130 : vector<8x8xf32>
    %cst_48 = arith.constant dense<0.000000e+00> : vector<8xf32>
    %132 = vector.multi_reduction <add>, %131, %cst_48 [1] : vector<8x8xf32> to vector<8xf32>
    %133 = vector.shape_cast %132 : vector<8xf32> to vector<8x1xf32>
    %134 = tpu.reciprocal %133 {approx = true} : vector<8x1xf32> -> vector<8x1xf32>
    %cst_49 = arith.constant dense<0.000000e+00> : vector<8x8xf32>
    %135 = tpu.matmul %131, %125, %cst_49 {dimension_numbers = #tpu.dot_dimension_numbers<[1], [0], [0], [1], [0, 0, 1, 1], [], []>} : vector<8x8xf32>, vector<8x8xf32>, vector<8x8xf32> -> vector<8x8xf32>
    %136 = vector.broadcast %134 : vector<8x1xf32> to vector<8x8xf32>
    %137 = arith.mulf %135, %136 : vector<8x8xf32>
    %c8_50 = arith.constant 8 : index
    %c24_51 = arith.constant 24 : index
    %138 = vector.load %arg7[%c8_50, %c24_51] : memref<16x32xf32, #tpu.memory_space<vmem>>, vector<8x8xf32>
    tpu.vector_store %arg7[%c8_50, %c24_51], %137 {strides = array<i32>} : memref<16x32xf32, #tpu.memory_space<vmem>>, vector<8x8xf32>,
    %c0_52 = arith.constant 0 : index
    %c0_53 = arith.constant 0 : index
    %139 = vector.load %arg7[%c0_52, %c0_53] : memref<16x32xf32, #tpu.memory_space<vmem>>, vector<16x32xf32>
    %c0_54 = arith.constant 0 : index
    %c0_55 = arith.constant 0 : index
    %c0_56 = arith.constant 0 : index
    %140 = vector.load %arg4[%c0_54, %c0_55, %c0_56] : memref<1x32x32xf32, #tpu.memory_space<vmem>>, vector<1x32x32xf32>
    %141 = vector.shape_cast %140 : vector<1x32x32xf32> to vector<32x32xf32>
    %cst_57 = arith.constant dense<0.000000e+00> : vector<16x32xf32>
    %142 = tpu.matmul %139, %141, %cst_57 {dimension_numbers = #tpu.dot_dimension_numbers<[1], [0], [0], [1], [0, 0, 1, 1], [], []>} : vector<16x32xf32>, vector<32x32xf32>, vector<16x32xf32> -> vector<16x32xf32>
    %c0_58 = arith.constant 0 : index
    %c0_59 = arith.constant 0 : index
    %c0_60 = arith.constant 0 : index
    %143 = vector.load %arg5[%c0_58, %c0_59, %c0_60] : memref<1x1x32xf32, #tpu.memory_space<vmem>>, vector<1x1x32xf32>
    %144 = vector.shape_cast %143 : vector<1x1x32xf32> to vector<1x32xf32>
    %145 = vector.broadcast %144 : vector<1x32xf32> to vector<16x32xf32>
    %146 = arith.addf %142, %145 : vector<16x32xf32>
    %147 = vector.shape_cast %146 : vector<16x32xf32> to vector<2x8x32xf32>
    %c0_61 = arith.constant 0 : index
    %c0_62 = arith.constant 0 : index
    %c0_63 = arith.constant 0 : index
    %c0_64 = arith.constant 0 : index
    %148 = vector.load %arg6[%c0_61, %c0_62, %c0_63, %c0_64] : memref<1x2x8x32xf32, #tpu.memory_space<vmem>>, vector<1x2x8x32xf32>
    %149 = vector.shape_cast %148 : vector<1x2x8x32xf32> to vector<2x8x32xf32>
    %150 = vector.shape_cast %147 : vector<2x8x32xf32> to vector<1x2x8x32xf32>
    tpu.vector_store %arg6[%c0_61, %c0_62, %c0_63, %c0_64], %150 {strides = array<i32>} : memref<1x2x8x32xf32, #tpu.memory_space<vmem>>, vector<1x2x8x32xf32>,
    return
  }
  func.func @transform_0(%arg0: i32, %arg1: i32) -> (i32, i32, i32, i32) {
    %c0_i32 = arith.constant 0 : i32
    %c0_i32_0 = arith.constant 0 : i32
    %c0_i32_1 = arith.constant 0 : i32
    return %arg0, %arg1, %c0_i32, %c0_i32_0 : i32, i32, i32, i32
  }
  func.func @transform_1(%arg0: i32, %arg1: i32) -> (i32, i32, i32) {
    %c0_i32 = arith.constant 0 : i32
    %c0_i32_0 = arith.constant 0 : i32
    %c0_i32_1 = arith.constant 0 : i32
    return %arg0, %c0_i32, %c0_i32_0 : i32, i32, i32
  }
  func.func @transform_2(%arg0: i32, %arg1: i32) -> (i32, i32, i32) {
    %c0_i32 = arith.constant 0 : i32
    %c0_i32_0 = arith.constant 0 : i32
    %c0_i32_1 = arith.constant 0 : i32
    return %arg0, %c0_i32, %c0_i32_0 : i32, i32, i32
  }
  func.func @transform_3(%arg0: i32, %arg1: i32) -> (i32, i32, i32) {
    %c0_i32 = arith.constant 0 : i32
    %c0_i32_0 = arith.constant 0 : i32
    %c0_i32_1 = arith.constant 0 : i32
    return %arg0, %c0_i32, %c0_i32_0 : i32, i32, i32
  }
  func.func @transform_4(%arg0: i32, %arg1: i32) -> (i32, i32, i32, i32) {
    %c0_i32 = arith.constant 0 : i32
    %c0_i32_0 = arith.constant 0 : i32
    %c0_i32_1 = arith.constant 0 : i32
    return %arg0, %arg1, %c0_i32, %c0_i32_0 : i32, i32, i32, i32
  }
}

</mosaic_0001>

<llo_original>
// kernel: tpu_custom_call.1
$region0: #{tpu_custom_call.1}
  #allocation0 [shape = 'u32[]', space=smem, size = 0x4, offset = 0x4, fixed_abs, tag = 'smem constant byte address 0x4 - core index']
  #allocation1 [shape = 'u32[144,128]{1,0:T(1,128)}', space=vmem, size = 0x12000, scoped, tag = 'internal scratch']
  #allocation2 [shape = 'f32[16,32]{1,0:T(8,128)}', space=vmem, size = 0x2000, scoped, tag = 'scratch operand']
  %s0 = inlined_call_operand.hbm [shape: f32[2,2,8,32], index: 0, kind: input, shape index: {}]
  %s1 = inlined_call_operand.hbm [shape: f32[2,32,96], index: 1, kind: input, shape index: {}]
  %s2 = inlined_call_operand.hbm [shape: f32[2,32,32], index: 2, kind: input, shape index: {}]
  %s3 = inlined_call_operand.vmem [shape: f32[2,1,32], index: 3, kind: input, shape index: {}]
  %s4 = inlined_call_operand.hbm [shape: f32[2,2,8,32], index: 4, kind: output, shape index: {}]
  %s5 = sld [smem:[#allocation0]]
  $region61: #{tpu_custom_call.1} parent=0
    _
  %s7 = ssub.s32 1, %s5
  %s8 = scalar_select 0, %s7, %s5
  $region1: #{tpu_custom_call.1} parent=0
    #allocation3 [shape = 'u8[16384]{0}', space=vmem, size = 0x4000, scoped, tag = 'input window, operand 0']
    #allocation4 [shape = 's32[2]{0}', space=sflag, size = 0x8, scoped, tag = 'scoped memory for tpu_custom_call.1']
    #allocation5 [shape = 's32[2]{0}', space=sflag, size = 0x8, scoped, tag = 'scoped memory for tpu_custom_call.1']
    #allocation6 [shape = 'u8[32768]{0}', space=vmem, size = 0x8000, scoped, tag = 'input window, operand 1']
    #allocation7 [shape = 's32[2]{0}', space=sflag, size = 0x8, scoped, tag = 'scoped memory for tpu_custom_call.1']
    #allocation8 [shape = 'u8[32768]{0}', space=vmem, size = 0x8000, scoped, tag = 'input window, operand 2']
    #allocation9 [shape = 'u8[16384]{0}', space=vmem, size = 0x4000, scoped, tag = 'output window, operand 0']
    %9 = vsyncpa [#allocation4], 0
    %s10 = scalar_lea.sflag [#allocation4], 1
    %11 = vsyncpa %s10, 0
    %12 = vsyncpa [#allocation7], 0
    %s13 = scalar_lea.sflag [#allocation7], 1
    %14 = vsyncpa %s13, 0
    %15 = vsyncpa [#allocation5], 0
    %s16 = scalar_lea.sflag [#allocation5], 1
    %17 = vsyncpa %s16, 0
    loop: start=0, step=1, limit=4
    $region2: #{tpu_custom_call.1} parent=1 // loop_pre_header
      _
    $region3: #{tpu_custom_call.1} parent=1 // loop_header
      %s19 = sphi 0, %s23
      %p20 = scmp.ge.s32.totalorder %s19, 4
      %s26 = sphi 0, %s38
      %s27 = sphi 0, %s34
      %s28 = sphi 0, %s26
      %s29 = sphi 0, %s27
      %s30 = sphi 0, %s28
      %s31 = sphi 0, %s29
      %s43 = sphi 0, %s45
      %s46 = sphi 0, %s43
      %s47 = sphi 0, %s46
      %s63 = sphi 0, %s47
      %s69 = sphi 0, %s71
      %s72 = sphi 0, %s69
      %s73 = sphi 0, %s72
      %s89 = sphi 0, %s73
      %s95 = sphi 0, %s97
      %s98 = sphi 0, %s95
      %s99 = sphi 0, %s98
      %s115 = sphi 0, %s99
      %s121 = sphi 0, %s123
      %s124 = sphi 0, %s121
      %s125 = sphi 0, %s124
      %s141 = sphi 0, %s125
      %s149 = sphi 0, %s151
      %s152 = sphi 0, %s149
      %s153 = sphi 0, %s152
      %s169 = sphi 0, %s153
    $region4: #{tpu_custom_call.1} parent=1 // loop_header_branch
      %22 = sbr.rel (%p20) target = $region8
    $region5: #{tpu_custom_call.1} parent=1 // loop_body
      %s24 = ssub.s32 %s19, 1
      %s25 = ssub.s32 %s19, 2
      %s32 = sadd.s32 1, %s27
      %p33 = scmp.ge.s32.totalorder %s32, 1
      %s34 = scalar_select %p33, 0, %s32
      %s35 = sadd.s32 1, %s26
      %s36 = scalar_select %p33, %s35, %s26
      %p37 = scmp.ge.s32.totalorder %s36, 2
      %s38 = scalar_select %p37, 0, %s36
      %s39 = ssub.s32 %s26, %s38
      %s40 = ssub.s32 %s27, %s34
      %s41 = sor.u32 %s39, %s40
      %p42 = scmp.eq.s32.totalorder %s41, 0
      %s44 = sadd.s32 %s43, 1
      %s45 = scalar_select %p42, %s43, %s44
      %p48 = pneg %p42
      %p49 = scmp.eq.s32.totalorder %s19, 1
      %p50 = por %p48, %p49
      %p51 = scmp.ne.s32.totalorder %s43, %s46
      %p52 = scmp.eq.s32.totalorder %s19, 0
      %p53 = por %p51, %p52
      %p54 = scmp.ne.s32.totalorder %s43, %s46
      %p55 = scmp.eq.s32.totalorder %s24, 1
      %p56 = por %p54, %p55
      %p57 = scmp.ne.s32.totalorder %s46, %s47
      %p58 = scmp.eq.s32.totalorder %s24, 0
      %p59 = por %p57, %p58
      %p60 = scmp.ne.s32.totalorder %s46, %s47
      %p61 = scmp.eq.s32.totalorder %s25, 1
      %p62 = por %p60, %p61
      %p64 = scmp.ne.s32.totalorder %s47, %s63
      %p65 = scmp.eq.s32.totalorder %s25, 0
      %p66 = por %p64, %p65
      %s67 = ssub.s32 %s26, %s38
      %p68 = scmp.eq.s32.totalorder %s67, 0
      %s70 = sadd.s32 %s69, 1
      %s71 = scalar_select %p68, %s69, %s70
      %p74 = pneg %p68
      %p75 = scmp.eq.s32.totalorder %s19, 1
      %p76 = por %p74, %p75
      %p77 = scmp.ne.s32.totalorder %s69, %s72
      %p78 = scmp.eq.s32.totalorder %s19, 0
      %p79 = por %p77, %p78
      %p80 = scmp.ne.s32.totalorder %s69, %s72
      %p81 = scmp.eq.s32.totalorder %s24, 1
      %p82 = por %p80, %p81
      %p83 = scmp.ne.s32.totalorder %s72, %s73
      %p84 = scmp.eq.s32.totalorder %s24, 0
      %p85 = por %p83, %p84
      %p86 = scmp.ne.s32.totalorder %s72, %s73
      %p87 = scmp.eq.s32.totalorder %s25, 1
      %p88 = por %p86, %p87
      %p90 = scmp.ne.s32.totalorder %s73, %s89
      %p91 = scmp.eq.s32.totalorder %s25, 0
      %p92 = por %p90, %p91
      %s93 = ssub.s32 %s26, %s38
      %p94 = scmp.eq.s32.totalorder %s93, 0
      %s96 = sadd.s32 %s95, 1
      %s97 = scalar_select %p94, %s95, %s96
      %p100 = pneg %p94
      %p101 = scmp.eq.s32.totalorder %s19, 1
      %p102 = por %p100, %p101
      %p103 = scmp.ne.s32.totalorder %s95, %s98
      %p104 = scmp.eq.s32.totalorder %s19, 0
      %p105 = por %p103, %p104
      %p106 = scmp.ne.s32.totalorder %s95, %s98
      %p107 = scmp.eq.s32.totalorder %s24, 1
      %p108 = por %p106, %p107
      %p109 = scmp.ne.s32.totalorder %s98, %s99
      %p110 = scmp.eq.s32.totalorder %s24, 0
      %p111 = por %p109, %p110
      %p112 = scmp.ne.s32.totalorder %s98, %s99
      %p113 = scmp.eq.s32.totalorder %s25, 1
      %p114 = por %p112, %p113
      %p116 = scmp.ne.s32.totalorder %s99, %s115
      %p117 = scmp.eq.s32.totalorder %s25, 0
      %p118 = por %p116, %p117
      %s119 = ssub.s32 %s26, %s38
      %p120 = scmp.eq.s32.totalorder %s119, 0
      %s122 = sadd.s32 %s121, 1
      %s123 = scalar_select %p120, %s121, %s122
      %p126 = pneg %p120
      %p127 = scmp.eq.s32.totalorder %s19, 1
      %p128 = por %p126, %p127
      %p129 = scmp.ne.s32.totalorder %s121, %s124
      %p130 = scmp.eq.s32.totalorder %s19, 0
      %p131 = por %p129, %p130
      %p132 = scmp.ne.s32.totalorder %s121, %s124
      %p133 = scmp.eq.s32.totalorder %s24, 1
      %p134 = por %p132, %p133
      %p135 = scmp.ne.s32.totalorder %s124, %s125
      %p136 = scmp.eq.s32.totalorder %s24, 0
      %p137 = por %p135, %p136
      %p138 = scmp.ne.s32.totalorder %s124, %s125
      %p139 = scmp.eq.s32.totalorder %s25, 1
      %p140 = por %p138, %p139
      %p142 = scmp.ne.s32.totalorder %s125, %s141
      %p143 = scmp.eq.s32.totalorder %s25, 0
      %p144 = por %p142, %p143
      %s145 = ssub.s32 %s26, %s38
      %s146 = ssub.s32 %s27, %s34
      %s147 = sor.u32 %s145, %s146
      %p148 = scmp.eq.s32.totalorder %s147, 0
      %s150 = sadd.s32 %s149, 1
      %s151 = scalar_select %p148, %s149, %s150
      %p154 = pneg %p148
      %p155 = scmp.eq.s32.totalorder %s19, 1
      %p156 = por %p154, %p155
      %p157 = scmp.ne.s32.totalorder %s149, %s152
      %p158 = scmp.eq.s32.totalorder %s19, 0
      %p159 = por %p157, %p158
      %p160 = scmp.ne.s32.totalorder %s149, %s152
      %p161 = scmp.eq.s32.totalorder %s24, 1
      %p162 = por %p160, %p161
      %p163 = scmp.ne.s32.totalorder %s152, %s153
      %p164 = scmp.eq.s32.totalorder %s24, 0
      %p165 = por %p163, %p164
      %p166 = scmp.ne.s32.totalorder %s152, %s153
      %p167 = scmp.eq.s32.totalorder %s25, 1
      %p168 = por %p166, %p167
      %p170 = scmp.ne.s32.totalorder %s153, %s169
      %p171 = scmp.eq.s32.totalorder %s25, 0
      %p172 = por %p170, %p171
      %p173 = scmp.le.s32.totalorder 1, %s19
      %p174 = scmp.lt.s32.totalorder %s19, 3
      %p175 = pnand %p173, %p174
      %p176 = pneg %p175
      // Predicated region
      $region9: #{tpu_custom_call.1} parent=5 // pred_check
        _
      $region10: #{tpu_custom_call.1} parent=5 // pred_check_branch
        %178 = sbr.rel (%p175) target = $region12
      $region11: #{tpu_custom_call.1} parent=5 // pred_region
        %s179 = ssub.s32 %s19, 1
      $region12: #{tpu_custom_call.1} parent=5 // pred_fallthru
        _
      %p180 = scmp.lt.s32.totalorder %s19, 2
      // Predicated region
      $region13: #{tpu_custom_call.1} parent=5 // pred_check
        %p181 = pneg %p180
      $region14: #{tpu_custom_call.1} parent=5 // pred_check_branch
        %183 = sbr.rel (%p181) target = $region16
      $region15: #{tpu_custom_call.1} parent=5 // pred_region
        // Predicated region
        $region17: #{tpu_custom_call.1} parent=15 // pred_check
          %p184 = pneg %p53
        $region18: #{tpu_custom_call.1} parent=15 // pred_check_branch
          %186 = sbr.rel (%p184) target = $region20
        $region19: #{tpu_custom_call.1} parent=15 // pred_region
          %s187 = sand.u32 %s43, 1
          %s188 = scalar_lea.sflag [#allocation4], %s187
          %s189 = sand.u32 %s43, 1
          %s190 = smul.addr %s189, 16
          %s191 = scalar_lea.vmem [#allocation3], %s190
          %s192 = smul.u32 2, %s27
          %s194 = ssub.s32 256, 256
          %195 = vsyncadd %s188, %s194
          %s196 = smul.addr %s26, 2
          %s197 = sadd.s32 %s192, %s196
          %s198 = smul.addr %s197, 128
          %s199 = scalar_lea.hbm %s0, %s198
          %s200 = sshll.u32 %s191, 4
          %s201 = int_to_ptr.vmem [resolvable:$true] %s200
          %206 = dma.hbm_to_vmem [thread:$0]  %s199, 256, %s201, %s188, 128, 128, 8
        $region20: #{tpu_custom_call.1} parent=15 // pred_fallthru
          _
        // Predicated region
        $region21: #{tpu_custom_call.1} parent=15 // pred_check
          %p207 = pneg %p79
        $region22: #{tpu_custom_call.1} parent=15 // pred_check_branch
          %209 = sbr.rel (%p207) target = $region24
        $region23: #{tpu_custom_call.1} parent=15 // pred_region
          %s210 = sand.u32 %s19, 1
          %s211 = scalar_lea.sflag [#allocation7], %s210
          %s212 = sand.u32 %s69, 1
          %s213 = smul.addr %s212, 32
          %s214 = scalar_lea.vmem [#allocation6], %s213
          %s216 = ssub.s32 512, 512
          %217 = vsyncadd %s211, %s216
          %s218 = smul.addr %s26, 4
          %s219 = smul.addr %s218, 128
          %s220 = scalar_lea.hbm %s1, %s219
          %s221 = sshll.u32 %s214, 4
          %s222 = int_to_ptr.vmem [resolvable:$true] %s221
          %227 = dma.hbm_to_vmem [thread:$0]  %s220, 512, %s222, %s211, 128, 128, 8
        $region24: #{tpu_custom_call.1} parent=15 // pred_fallthru
          _
        // Predicated region
        $region25: #{tpu_custom_call.1} parent=15 // pred_check
          %p228 = pneg %p105
        $region26: #{tpu_custom_call.1} parent=15 // pred_check_branch
          %230 = sbr.rel (%p228) target = $region28
        $region27: #{tpu_custom_call.1} parent=15 // pred_region
          %s231 = sand.u32 %s19, 1
          %s232 = scalar_lea.sflag [#allocation7], %s231
          %s233 = sand.u32 %s95, 1
          %s234 = smul.addr %s233, 32
          %s235 = scalar_lea.vmem [#allocation8], %s234
          %s237 = ssub.s32 512, 512
          %238 = vsyncadd %s232, %s237
          %s239 = smul.addr %s26, 4
          %s240 = smul.addr %s239, 128
          %s241 = scalar_lea.hbm %s2, %s240
          %s242 = sshll.u32 %s235, 4
          %s243 = int_to_ptr.vmem [resolvable:$true] %s242
          %248 = dma.hbm_to_vmem [thread:$0]  %s241, 512, %s243, %s232, 128, 128, 8
        $region28: #{tpu_custom_call.1} parent=15 // pred_fallthru
          _
        // Predicated region
        $region29: #{tpu_custom_call.1} parent=15 // pred_check
          %p249 = pneg %p131
        $region30: #{tpu_custom_call.1} parent=15 // pred_check_branch
          %251 = sbr.rel (%p249) target = $region32
        $region31: #{tpu_custom_call.1} parent=15 // pred_region
          %p252 = scmp.lt.s32.totalorder %s26, 1
          %s253 = scalar_select %p252, %s26, 1
          %s254 = scalar_lea.vmem %s3, %s253
        $region32: #{tpu_custom_call.1} parent=15 // pred_fallthru
          _
      $region16: #{tpu_custom_call.1} parent=5 // pred_fallthru
        _
      %p255 = scmp.le.s32.totalorder 1, %s19
      %p256 = scmp.lt.s32.totalorder %s19, 3
      %p257 = pnand %p255, %p256
      %p258 = pneg %p257
      // Predicated region
      $region33: #{tpu_custom_call.1} parent=5 // pred_check
        _
      $region34: #{tpu_custom_call.1} parent=5 // pred_check_branch
        %260 = sbr.rel (%p257) target = $region36
      $region35: #{tpu_custom_call.1} parent=5 // pred_region
        %s261 = ssub.s32 %s19, 1
        %s262 = sand.u32 %s46, 1
        %s263 = scalar_lea.sflag [#allocation4], %s262
        %s264 = sand.u32 %s46, 1
        %s265 = smul.addr %s264, 16
        %s266 = scalar_lea.vmem [#allocation3], %s265
        // Predicated region
        $region37: #{tpu_custom_call.1} parent=35 // pred_check
          %p267 = pneg %p59
        $region38: #{tpu_custom_call.1} parent=35 // pred_check_branch
          %269 = sbr.rel (%p267) target = $region40
        $region39: #{tpu_custom_call.1} parent=35 // pred_region
          %270 = dma.done %s263, 256
        $region40: #{tpu_custom_call.1} parent=35 // pred_fallthru
          _
        %s271 = sand.u32 %s24, 1
        %s272 = scalar_lea.sflag [#allocation7], %s271
        %s273 = sand.u32 %s72, 1
        %s274 = smul.addr %s273, 32
        %s275 = scalar_lea.vmem [#allocation6], %s274
        // Predicated region
        $region41: #{tpu_custom_call.1} parent=35 // pred_check
          %p276 = pneg %p85
        $region42: #{tpu_custom_call.1} parent=35 // pred_check_branch
          %278 = sbr.rel (%p276) target = $region44
        $region43: #{tpu_custom_call.1} parent=35 // pred_region
          %279 = dma.done %s272, 512
        $region44: #{tpu_custom_call.1} parent=35 // pred_fallthru
          _
        %s280 = sand.u32 %s24, 1
        %s281 = scalar_lea.sflag [#allocation7], %s280
        %s282 = sand.u32 %s98, 1
        %s283 = smul.addr %s282, 32
        %s284 = scalar_lea.vmem [#allocation8], %s283
        // Predicated region
        $region45: #{tpu_custom_call.1} parent=35 // pred_check
          %p285 = pneg %p111
        $region46: #{tpu_custom_call.1} parent=35 // pred_check_branch
          %287 = sbr.rel (%p285) target = $region48
        $region47: #{tpu_custom_call.1} parent=35 // pred_region
          %288 = dma.done %s281, 512
        $region48: #{tpu_custom_call.1} parent=35 // pred_fallthru
          _
        %s289 = sand.u32 %s46, 1
        %s290 = scalar_lea.sflag [#allocation4], %s289
        %s291 = sand.u32 %s46, 1
        %s292 = smul.addr %s291, 16
        %s293 = scalar_lea.vmem [#allocation3], %s292
        %p294 = pneg %p59
        %p295 = pneg %p56
        %s296 = sand.u32 %s24, 1
        %s297 = scalar_lea.sflag [#allocation7], %s296
        %s298 = sand.u32 %s72, 1
        %s299 = smul.addr %s298, 32
        %s300 = scalar_lea.vmem [#allocation6], %s299
        %p301 = pneg %p85
        %p302 = pneg %p82
        %s303 = sand.u32 %s24, 1
        %s304 = scalar_lea.sflag [#allocation7], %s303
        %s305 = sand.u32 %s98, 1
        %s306 = smul.addr %s305, 32
        %s307 = scalar_lea.vmem [#allocation8], %s306
        %p308 = pneg %p111
        %p309 = pneg %p108
        %p310 = scmp.lt.s32.totalorder %s28, 1
        %s311 = scalar_select %p310, %s28, 1
        %s312 = scalar_lea.vmem %s3, %s311
        %p313 = pneg %p137
        %p314 = pneg %p134
        %p315 = pneg %p165
        %p316 = pneg %p162
        %s317 = sand.u32 %s152, 1
        %s318 = scalar_lea.sflag [#allocation5], %s317
        %s319 = sand.u32 %s152, 1
        %s320 = smul.addr %s319, 16
        %s321 = scalar_lea.vmem [#allocation9], %s320
        %s322 = smul.u32 2, %s29
        %p323 = scmp.lt.s32.totalorder %s28, 1
        %s324 = scalar_select %p323, %s28, 1
        %s325 = scalar_lea.vmem %s3, %s324
        %s326 = smul.u32 2, %s29
        %v327 = vld [vmem:[%s266] sm:$0xff]
        %v328 = vld [vmem:[%s266 + $0x8] sm:$0xff]
        %v329 = vld [vmem:[%s275] sm:$0xff]
        %v330 = vld [vmem:[%s275 + $0x8] sm:$0xff]
        %v331 = vld [vmem:[%s275 + $0x10] sm:$0xff]
        %v332 = vld [vmem:[%s275 + $0x18] sm:$0xff]
        %vm333 = vcmask 261120
        %v335 = vsel %vm333, %v327, 0
        %v338 = vsel %vm333, %v328, 0
        %340 = vmatprep.subr.mxu0 0.0
        %341 = vmatpush1.msra.mxu0 %v329
        %342 = vmatprep.subr.mxu0 0.0
        %343 = vmatpush1.msra.mxu0 %v330
        %344 = vmatprep.subr.mxu0 0.0
        %345 = vmatpush1.msra.mxu0 %v331
        %346 = vmatprep.subr.mxu0 0.0
        %347 = vmatpush1.msra.mxu0 %v332
        %348 = vmatprep.subr.mxu0 0.0
        %349 = vmatpush1.msra.mxu0 0.0
        %350 = vmatprep.subr.mxu0 0.0
        %351 = vmatpush1.msra.mxu0 0.0
        %352 = vmatprep.subr.mxu0 0.0
        %353 = vmatpush1.msra.mxu0 0.0
        %354 = vmatprep.subr.mxu0 0.0
        %355 = vmatpush1.msra.mxu0 0.0
        %356 = vmatprep.subr.mxu0 0.0
        %357 = vmatpush1.msra.mxu0 0.0
        %358 = vmatprep.subr.mxu0 0.0
        %359 = vmatpush1.msra.mxu0 0.0
        %360 = vmatprep.subr.mxu0 0.0
        %361 = vmatpush1.msra.mxu0 0.0
        %362 = vmatprep.subr.mxu0 0.0
        %363 = vmatpush1.msra.mxu0 0.0
        %364 = vmatprep.subr.mxu0 0.0
        %365 = vmatpush1.msra.mxu0 0.0
        %366 = vmatprep.subr.mxu0 0.0
        %367 = vmatpush1.msra.mxu0 0.0
        %368 = vmatprep.subr.mxu0 0.0
        %369 = vmatpush1.msra.mxu0 0.0
        %370 = vmatprep.subr.mxu0 0.0
        %371 = vmatpush1.msra.mxu0 0.0
        %372 = vmatprep.subr.mxu0 0.0
        %373 = vmatpush1.msra.mxu0 0.0
        %374 = vmatprep.subr.mxu0 0.0
        %375 = vmatpush1.msra.mxu0 0.0
        %376 = vmatprep.subr.mxu0 0.0
        %377 = vmatpush1.msra.mxu0 0.0
        %378 = vmatprep.subr.mxu0 0.0
        %379 = vmatpush1.msra.mxu0 0.0
        %380 = vmatprep.subr.mxu0 0.0
        %381 = vmatpush1.msra.mxu0 0.0
        %382 = vmatprep.subr.mxu0 0.0
        %383 = vmatpush1.msra.mxu0 0.0
        %384 = vmatprep.subr.mxu0 0.0
        %385 = vmatpush1.msra.mxu0 0.0
        %386 = vmatprep.subr.mxu0 0.0
        %387 = vmatpush1.msra.mxu0 0.0
        %388 = vmatprep.subr.mxu0 0.0
        %389 = vmatpush1.msra.mxu0 0.0
        %390 = vmatprep.subr.mxu0 0.0
        %391 = vmatpush1.msra.mxu0 0.0
        %392 = vmatprep.subr.mxu0 0.0
        %393 = vmatpush1.msra.mxu0 0.0
        %394 = vmatprep.subr.mxu0 0.0
        %395 = vmatpush1.msra.mxu0 0.0
        %396 = vmatprep.subr.mxu0 0.0
        %397 = vmatpush1.msra.mxu0 0.0
        %398 = vmatprep.subr.mxu0 0.0
        %399 = vmatpush1.msra.mxu0 0.0
        %400 = vmatprep.subr.mxu0 0.0
        %401 = vmatpush1.msra.mxu0 0.0
        %402 = vmatprep.subr.mxu0 0.0
        %403 = vmatpush1.msra.mxu0 0.0
        %404 = vmatprep.mubr.f32.mxu0 0.0
        %405 = vmatmul.mubr.f32.gmra.mrb[0].mxu0 %v335
        %v406 = vpop.f32.mrb[0].mxu0
        %v407 = vadd.f32 0.0, %v406
        %v408 = vpop.f32.mrb[0].mxu0
        %409 = vmatprep.mubr.f32.mxu0 0.0
        %410 = vmatmul.mubr.f32.gmra.mrb[0].mxu0 %v338
        %v411 = vpop.f32.mrb[0].mxu0
        %v412 = vadd.f32 0.0, %v411
        %v413 = vpop.f32.mrb[0].mxu0
        %414 = vdwg.mxu0
        %v415 = vmul.f32 %v407, 0.35355338
        %v416 = vmul.f32 %v412, 0.35355338
        %418 = vrot.lane.b32.xlu0 %v407, 96
        %v419 = vpop.permute.xlu0 %418
        %vm420 = vcmask 64512
        %v422 = vsel %vm420, %v415, 0
        %v424 = vsel %vm420, %v419, 0
        %426 = vmatprep.subr.mxu0 0.0
        %427 = vmatpush1.xpose.msra.mxu0 %v424
        %428 = vmatprep.subr.mxu0 0.0
        %429 = vmatpush1.xpose.msra.mxu0 0.0
        %430 = vmatprep.subr.mxu0 0.0
        %431 = vmatpush1.xpose.msra.mxu0 0.0
        %432 = vmatprep.subr.mxu0 0.0
        %433 = vmatpush1.xpose.msra.mxu0 0.0
        %434 = vmatprep.subr.mxu0 0.0
        %435 = vmatpush1.xpose.msra.mxu0 0.0
        %436 = vmatprep.subr.mxu0 0.0
        %437 = vmatpush1.xpose.msra.mxu0 0.0
        %438 = vmatprep.subr.mxu0 0.0
        %439 = vmatpush1.xpose.msra.mxu0 0.0
        %440 = vmatprep.subr.mxu0 0.0
        %441 = vmatpush1.xpose.msra.mxu0 0.0
        %442 = vmatprep.subr.mxu0 0.0
        %443 = vmatpush1.xpose.msra.mxu0 0.0
        %444 = vmatprep.subr.mxu0 0.0
        %445 = vmatpush1.xpose.msra.mxu0 0.0
        %446 = vmatprep.subr.mxu0 0.0
        %447 = vmatpush1.xpose.msra.mxu0 0.0
        %448 = vmatprep.subr.mxu0 0.0
        %449 = vmatpush1.xpose.msra.mxu0 0.0
        %450 = vmatprep.subr.mxu0 0.0
        %451 = vmatpush1.xpose.msra.mxu0 0.0
        %452 = vmatprep.subr.mxu0 0.0
        %453 = vmatpush1.xpose.msra.mxu0 0.0
        %454 = vmatprep.subr.mxu0 0.0
        %455 = vmatpush1.xpose.msra.mxu0 0.0
        %456 = vmatprep.subr.mxu0 0.0
        %457 = vmatpush1.xpose.msra.mxu0 0.0
        %458 = vmatprep.subr.mxu0 0.0
        %459 = vmatpush1.xpose.msra.mxu0 0.0
        %460 = vmatprep.subr.mxu0 0.0
        %461 = vmatpush1.xpose.msra.mxu0 0.0
        %462 = vmatprep.subr.mxu0 0.0
        %463 = vmatpush1.xpose.msra.mxu0 0.0
        %464 = vmatprep.subr.mxu0 0.0
        %465 = vmatpush1.xpose.msra.mxu0 0.0
        %466 = vmatprep.subr.mxu0 0.0
        %467 = vmatpush1.xpose.msra.mxu0 0.0
        %468 = vmatprep.subr.mxu0 0.0
        %469 = vmatpush1.xpose.msra.mxu0 0.0
        %470 = vmatprep.subr.mxu0 0.0
        %471 = vmatpush1.xpose.msra.mxu0 0.0
        %472 = vmatprep.subr.mxu0 0.0
        %473 = vmatpush1.xpose.msra.mxu0 0.0
        %474 = vmatprep.subr.mxu0 0.0
        %475 = vmatpush1.xpose.msra.mxu0 0.0
        %476 = vmatprep.subr.mxu0 0.0
        %477 = vmatpush1.xpose.msra.mxu0 0.0
        %478 = vmatprep.subr.mxu0 0.0
        %479 = vmatpush1.xpose.msra.mxu0 0.0
        %480 = vmatprep.subr.mxu0 0.0
        %481 = vmatpush1.xpose.msra.mxu0 0.0
        %482 = vmatprep.subr.mxu0 0.0
        %483 = vmatpush1.xpose.msra.mxu0 0.0
        %484 = vmatprep.subr.mxu0 0.0
        %485 = vmatpush1.xpose.msra.mxu0 0.0
        %486 = vmatprep.subr.mxu0 0.0
        %487 = vmatpush1.xpose.msra.mxu0 0.0
        %488 = vmatprep.subr.mxu0 0.0
        %489 = vmatpush1.xpose.msra.mxu0 0.0
        %490 = vmatprep.mubr.f32.mxu0 0.0
        %491 = vmatmul.mubr.f32.gmra.mrb[0].mxu0 %v422
        %v492 = vpop.f32.mrb[0].mxu0
        %v493 = vadd.f32 0.0, %v492
        %v494 = vpop.f32.mrb[0].mxu0
        %495 = vdwg.mxu0
        %v496 = vsel %vm420, %v493, -inf
        %497 = vmax.xlane.f32.xlu0 %v496
        %v498 = vpop.xlane.xlu0 %497
        %v499 = vsub.f32 %v493, %v498
        %v500 = vmul.f32 %v499, 1.442695
        %v501 = vpow.pop %v500
        %v502 = vsel %vm420, %v501, 0.0
        %503 = vadd.xlane.f32.xlu0 %v502
        %v504 = vpop.xlane.xlu0 %503
        %v505 = vrcp.pop %v504
        %506 = vrot.lane.b32.xlu0 %v407, 64
        %v507 = vpop.permute.xlu0 %506
        %v510 = vsel %vm420, %v501, 0
        %512 = vmatprep.subr.mxu0 0.0
        %513 = vmatpush1.msra.mxu0 %v507
        %514 = vmatprep.subr.mxu0 0.0
        %515 = vmatpush1.msra.mxu0 0.0
        %516 = vmatprep.subr.mxu0 0.0
        %517 = vmatpush1.msra.mxu0 0.0
        %518 = vmatprep.subr.mxu0 0.0
        %519 = vmatpush1.msra.mxu0 0.0
        %520 = vmatprep.subr.mxu0 0.0
        %521 = vmatpush1.msra.mxu0 0.0
        %522 = vmatprep.subr.mxu0 0.0
        %523 = vmatpush1.msra.mxu0 0.0
        %524 = vmatprep.subr.mxu0 0.0
        %525 = vmatpush1.msra.mxu0 0.0
        %526 = vmatprep.subr.mxu0 0.0
        %527 = vmatpush1.msra.mxu0 0.0
        %528 = vmatprep.subr.mxu0 0.0
        %529 = vmatpush1.msra.mxu0 0.0
        %530 = vmatprep.subr.mxu0 0.0
        %531 = vmatpush1.msra.mxu0 0.0
        %532 = vmatprep.subr.mxu0 0.0
        %533 = vmatpush1.msra.mxu0 0.0
        %534 = vmatprep.subr.mxu0 0.0
        %535 = vmatpush1.msra.mxu0 0.0
        %536 = vmatprep.subr.mxu0 0.0
        %537 = vmatpush1.msra.mxu0 0.0
        %538 = vmatprep.subr.mxu0 0.0
        %539 = vmatpush1.msra.mxu0 0.0
        %540 = vmatprep.subr.mxu0 0.0
        %541 = vmatpush1.msra.mxu0 0.0
        %542 = vmatprep.subr.mxu0 0.0
        %543 = vmatpush1.msra.mxu0 0.0
        %544 = vmatprep.subr.mxu0 0.0
        %545 = vmatpush1.msra.mxu0 0.0
        %546 = vmatprep.subr.mxu0 0.0
        %547 = vmatpush1.msra.mxu0 0.0
        %548 = vmatprep.subr.mxu0 0.0
        %549 = vmatpush1.msra.mxu0 0.0
        %550 = vmatprep.subr.mxu0 0.0
        %551 = vmatpush1.msra.mxu0 0.0
        %552 = vmatprep.subr.mxu0 0.0
        %553 = vmatpush1.msra.mxu0 0.0
        %554 = vmatprep.subr.mxu0 0.0
        %555 = vmatpush1.msra.mxu0 0.0
        %556 = vmatprep.subr.mxu0 0.0
        %557 = vmatpush1.msra.mxu0 0.0
        %558 = vmatprep.subr.mxu0 0.0
        %559 = vmatpush1.msra.mxu0 0.0
        %560 = vmatprep.subr.mxu0 0.0
        %561 = vmatpush1.msra.mxu0 0.0
        %562 = vmatprep.subr.mxu0 0.0
        %563 = vmatpush1.msra.mxu0 0.0
        %564 = vmatprep.subr.mxu0 0.0
        %565 = vmatpush1.msra.mxu0 0.0
        %566 = vmatprep.subr.mxu0 0.0
        %567 = vmatpush1.msra.mxu0 0.0
        %568 = vmatprep.subr.mxu0 0.0
        %569 = vmatpush1.msra.mxu0 0.0
        %570 = vmatprep.subr.mxu0 0.0
        %571 = vmatpush1.msra.mxu0 0.0
        %572 = vmatprep.subr.mxu0 0.0
        %573 = vmatpush1.msra.mxu0 0.0
        %574 = vmatprep.subr.mxu0 0.0
        %575 = vmatpush1.msra.mxu0 0.0
        %576 = vmatprep.mubr.f32.mxu0 0.0
        %577 = vmatmul.mubr.f32.gmra.mrb[0].mxu0 %v510
        %v578 = vpop.f32.mrb[0].mxu0
        %v579 = vadd.f32 0.0, %v578
        %v580 = vpop.f32.mrb[0].mxu0
        %581 = vdwg.mxu0
        %v582 = vmul.f32 %v579, %v505
        %583 = vst.msk [vmem:[#allocation2] sm:$0xff] %vm420, %v582
        %584 = vrot.lane.b32.xlu0 %v415, 120
        %v585 = vpop.permute.xlu0 %584
        %586 = vrot.lane.b32.xlu0 %v407, 88
        %v587 = vpop.permute.xlu0 %586
        %v588 = vsel %vm420, %v585, 0
        %v590 = vsel %vm420, %v587, 0
        %592 = vmatprep.subr.mxu0 0.0
        %593 = vmatpush1.xpose.msra.mxu0 %v590
        %594 = vmatprep.subr.mxu0 0.0
        %595 = vmatpush1.xpose.msra.mxu0 0.0
        %596 = vmatprep.subr.mxu0 0.0
        %597 = vmatpush1.xpose.msra.mxu0 0.0
        %598 = vmatprep.subr.mxu0 0.0
        %599 = vmatpush1.xpose.msra.mxu0 0.0
        %600 = vmatprep.subr.mxu0 0.0
        %601 = vmatpush1.xpose.msra.mxu0 0.0
        %602 = vmatprep.subr.mxu0 0.0
        %603 = vmatpush1.xpose.msra.mxu0 0.0
        %604 = vmatprep.subr.mxu0 0.0
        %605 = vmatpush1.xpose.msra.mxu0 0.0
        %606 = vmatprep.subr.mxu0 0.0
        %607 = vmatpush1.xpose.msra.mxu0 0.0
        %608 = vmatprep.subr.mxu0 0.0
        %609 = vmatpush1.xpose.msra.mxu0 0.0
        %610 = vmatprep.subr.mxu0 0.0
        %611 = vmatpush1.xpose.msra.mxu0 0.0
        %612 = vmatprep.subr.mxu0 0.0
        %613 = vmatpush1.xpose.msra.mxu0 0.0
        %614 = vmatprep.subr.mxu0 0.0
        %615 = vmatpush1.xpose.msra.mxu0 0.0
        %616 = vmatprep.subr.mxu0 0.0
        %617 = vmatpush1.xpose.msra.mxu0 0.0
        %618 = vmatprep.subr.mxu0 0.0
        %619 = vmatpush1.xpose.msra.mxu0 0.0
        %620 = vmatprep.subr.mxu0 0.0
        %621 = vmatpush1.xpose.msra.mxu0 0.0
        %622 = vmatprep.subr.mxu0 0.0
        %623 = vmatpush1.xpose.msra.mxu0 0.0
        %624 = vmatprep.subr.mxu0 0.0
        %625 = vmatpush1.xpose.msra.mxu0 0.0
        %626 = vmatprep.subr.mxu0 0.0
        %627 = vmatpush1.xpose.msra.mxu0 0.0
        %628 = vmatprep.subr.mxu0 0.0
        %629 = vmatpush1.xpose.msra.mxu0 0.0
        %630 = vmatprep.subr.mxu0 0.0
        %631 = vmatpush1.xpose.msra.mxu0 0.0
        %632 = vmatprep.subr.mxu0 0.0
        %633 = vmatpush1.xpose.msra.mxu0 0.0
        %634 = vmatprep.subr.mxu0 0.0
        %635 = vmatpush1.xpose.msra.mxu0 0.0
        %636 = vmatprep.subr.mxu0 0.0
        %637 = vmatpush1.xpose.msra.mxu0 0.0
        %638 = vmatprep.subr.mxu0 0.0
        %639 = vmatpush1.xpose.msra.mxu0 0.0
        %640 = vmatprep.subr.mxu0 0.0
        %641 = vmatpush1.xpose.msra.mxu0 0.0
        %642 = vmatprep.subr.mxu0 0.0
        %643 = vmatpush1.xpose.msra.mxu0 0.0
        %644 = vmatprep.subr.mxu0 0.0
        %645 = vmatpush1.xpose.msra.mxu0 0.0
        %646 = vmatprep.subr.mxu0 0.0
        %647 = vmatpush1.xpose.msra.mxu0 0.0
        %648 = vmatprep.subr.mxu0 0.0
        %649 = vmatpush1.xpose.msra.mxu0 0.0
        %650 = vmatprep.subr.mxu0 0.0
        %651 = vmatpush1.xpose.msra.mxu0 0.0
        %652 = vmatprep.subr.mxu0 0.0
        %653 = vmatpush1.xpose.msra.mxu0 0.0
        %654 = vmatprep.subr.mxu0 0.0
        %655 = vmatpush1.xpose.msra.mxu0 0.0
        %656 = vmatprep.mubr.f32.mxu0 0.0
        %657 = vmatmul.mubr.f32.gmra.mrb[0].mxu0 %v588
        %v658 = vpop.f32.mrb[0].mxu0
        %v659 = vadd.f32 0.0, %v658
        %v660 = vpop.f32.mrb[0].mxu0
        %661 = vdwg.mxu0
        %v662 = vsel %vm420, %v659, -inf
        %663 = vmax.xlane.f32.xlu0 %v662
        %v664 = vpop.xlane.xlu0 %663
        %v665 = vsub.f32 %v659, %v664
        %v666 = vmul.f32 %v665, 1.442695
        %v667 = vpow.pop %v666
        %v668 = vsel %vm420, %v667, 0.0
        %669 = vadd.xlane.f32.xlu0 %v668
        %v670 = vpop.xlane.xlu0 %669
        %v671 = vrcp.pop %v670
        %672 = vrot.lane.b32.xlu0 %v407, 56
        %v673 = vpop.permute.xlu0 %672
        %v676 = vsel %vm420, %v667, 0
        %678 = vmatprep.subr.mxu0 0.0
        %679 = vmatpush1.msra.mxu0 %v673
        %680 = vmatprep.subr.mxu0 0.0
        %681 = vmatpush1.msra.mxu0 0.0
        %682 = vmatprep.subr.mxu0 0.0
        %683 = vmatpush1.msra.mxu0 0.0
        %684 = vmatprep.subr.mxu0 0.0
        %685 = vmatpush1.msra.mxu0 0.0
        %686 = vmatprep.subr.mxu0 0.0
        %687 = vmatpush1.msra.mxu0 0.0
        %688 = vmatprep.subr.mxu0 0.0
        %689 = vmatpush1.msra.mxu0 0.0
        %690 = vmatprep.subr.mxu0 0.0
        %691 = vmatpush1.msra.mxu0 0.0
        %692 = vmatprep.subr.mxu0 0.0
        %693 = vmatpush1.msra.mxu0 0.0
        %694 = vmatprep.subr.mxu0 0.0
        %695 = vmatpush1.msra.mxu0 0.0
        %696 = vmatprep.subr.mxu0 0.0
        %697 = vmatpush1.msra.mxu0 0.0
        %698 = vmatprep.subr.mxu0 0.0
        %699 = vmatpush1.msra.mxu0 0.0
        %700 = vmatprep.subr.mxu0 0.0
        %701 = vmatpush1.msra.mxu0 0.0
        %702 = vmatprep.subr.mxu0 0.0
        %703 = vmatpush1.msra.mxu0 0.0
        %704 = vmatprep.subr.mxu0 0.0
        %705 = vmatpush1.msra.mxu0 0.0
        %706 = vmatprep.subr.mxu0 0.0
        %707 = vmatpush1.msra.mxu0 0.0
        %708 = vmatprep.subr.mxu0 0.0
        %709 = vmatpush1.msra.mxu0 0.0
        %710 = vmatprep.subr.mxu0 0.0
        %711 = vmatpush1.msra.mxu0 0.0
        %712 = vmatprep.subr.mxu0 0.0
        %713 = vmatpush1.msra.mxu0 0.0
        %714 = vmatprep.subr.mxu0 0.0
        %715 = vmatpush1.msra.mxu0 0.0
        %716 = vmatprep.subr.mxu0 0.0
        %717 = vmatpush1.msra.mxu0 0.0
        %718 = vmatprep.subr.mxu0 0.0
        %719 = vmatpush1.msra.mxu0 0.0
        %720 = vmatprep.subr.mxu0 0.0
        %721 = vmatpush1.msra.mxu0 0.0
        %722 = vmatprep.subr.mxu0 0.0
        %723 = vmatpush1.msra.mxu0 0.0
        %724 = vmatprep.subr.mxu0 0.0
        %725 = vmatpush1.msra.mxu0 0.0
        %726 = vmatprep.subr.mxu0 0.0
        %727 = vmatpush1.msra.mxu0 0.0
        %728 = vmatprep.subr.mxu0 0.0
        %729 = vmatpush1.msra.mxu0 0.0
        %730 = vmatprep.subr.mxu0 0.0
        %731 = vmatpush1.msra.mxu0 0.0
        %732 = vmatprep.subr.mxu0 0.0
        %733 = vmatpush1.msra.mxu0 0.0
        %734 = vmatprep.subr.mxu0 0.0
        %735 = vmatpush1.msra.mxu0 0.0
        %736 = vmatprep.subr.mxu0 0.0
        %737 = vmatpush1.msra.mxu0 0.0
        %738 = vmatprep.subr.mxu0 0.0
        %739 = vmatpush1.msra.mxu0 0.0
        %740 = vmatprep.subr.mxu0 0.0
        %741 = vmatpush1.msra.mxu0 0.0
        %742 = vmatprep.mubr.f32.mxu0 0.0
        %743 = vmatmul.mubr.f32.gmra.mrb[0].mxu0 %v676
        %v744 = vpop.f32.mrb[0].mxu0
        %v745 = vadd.f32 0.0, %v744
        %v746 = vpop.f32.mrb[0].mxu0
        %747 = vdwg.mxu0
        %v748 = vmul.f32 %v745, %v671
        %750 = vrot.lane.b32.xlu0 %v748, 8
        %v751 = vpop.permute.xlu0 %750
        %vm753 = vcmask 130112
        %754 = vst.msk [vmem:[#allocation2] sm:$0xff] %vm753, %v751
        %755 = vrot.lane.b32.xlu0 %v415, 112
        %v756 = vpop.permute.xlu0 %755
        %757 = vrot.lane.b32.xlu0 %v407, 80
        %v758 = vpop.permute.xlu0 %757
        %v759 = vsel %vm420, %v756, 0
        %v761 = vsel %vm420, %v758, 0
        %763 = vmatprep.subr.mxu0 0.0
        %764 = vmatpush1.xpose.msra.mxu0 %v761
        %765 = vmatprep.subr.mxu0 0.0
        %766 = vmatpush1.xpose.msra.mxu0 0.0
        %767 = vmatprep.subr.mxu0 0.0
        %768 = vmatpush1.xpose.msra.mxu0 0.0
        %769 = vmatprep.subr.mxu0 0.0
        %770 = vmatpush1.xpose.msra.mxu0 0.0
        %771 = vmatprep.subr.mxu0 0.0
        %772 = vmatpush1.xpose.msra.mxu0 0.0
        %773 = vmatprep.subr.mxu0 0.0
        %774 = vmatpush1.xpose.msra.mxu0 0.0
        %775 = vmatprep.subr.mxu0 0.0
        %776 = vmatpush1.xpose.msra.mxu0 0.0
        %777 = vmatprep.subr.mxu0 0.0
        %778 = vmatpush1.xpose.msra.mxu0 0.0
        %779 = vmatprep.subr.mxu0 0.0
        %780 = vmatpush1.xpose.msra.mxu0 0.0
        %781 = vmatprep.subr.mxu0 0.0
        %782 = vmatpush1.xpose.msra.mxu0 0.0
        %783 = vmatprep.subr.mxu0 0.0
        %784 = vmatpush1.xpose.msra.mxu0 0.0
        %785 = vmatprep.subr.mxu0 0.0
        %786 = vmatpush1.xpose.msra.mxu0 0.0
        %787 = vmatprep.subr.mxu0 0.0
        %788 = vmatpush1.xpose.msra.mxu0 0.0
        %789 = vmatprep.subr.mxu0 0.0
        %790 = vmatpush1.xpose.msra.mxu0 0.0
        %791 = vmatprep.subr.mxu0 0.0
        %792 = vmatpush1.xpose.msra.mxu0 0.0
        %793 = vmatprep.subr.mxu0 0.0
        %794 = vmatpush1.xpose.msra.mxu0 0.0
        %795 = vmatprep.subr.mxu0 0.0
        %796 = vmatpush1.xpose.msra.mxu0 0.0
        %797 = vmatprep.subr.mxu0 0.0
        %798 = vmatpush1.xpose.msra.mxu0 0.0
        %799 = vmatprep.subr.mxu0 0.0
        %800 = vmatpush1.xpose.msra.mxu0 0.0
        %801 = vmatprep.subr.mxu0 0.0
        %802 = vmatpush1.xpose.msra.mxu0 0.0
        %803 = vmatprep.subr.mxu0 0.0
        %804 = vmatpush1.xpose.msra.mxu0 0.0
        %805 = vmatprep.subr.mxu0 0.0
        %806 = vmatpush1.xpose.msra.mxu0 0.0
        %807 = vmatprep.subr.mxu0 0.0
        %808 = vmatpush1.xpose.msra.mxu0 0.0
        %809 = vmatprep.subr.mxu0 0.0
        %810 = vmatpush1.xpose.msra.mxu0 0.0
        %811 = vmatprep.subr.mxu0 0.0
        %812 = vmatpush1.xpose.msra.mxu0 0.0
        %813 = vmatprep.subr.mxu0 0.0
        %814 = vmatpush1.xpose.msra.mxu0 0.0
        %815 = vmatprep.subr.mxu0 0.0
        %816 = vmatpush1.xpose.msra.mxu0 0.0
        %817 = vmatprep.subr.mxu0 0.0
        %818 = vmatpush1.xpose.msra.mxu0 0.0
        %819 = vmatprep.subr.mxu0 0.0
        %820 = vmatpush1.xpose.msra.mxu0 0.0
        %821 = vmatprep.subr.mxu0 0.0
        %822 = vmatpush1.xpose.msra.mxu0 0.0
        %823 = vmatprep.subr.mxu0 0.0
        %824 = vmatpush1.xpose.msra.mxu0 0.0
        %825 = vmatprep.subr.mxu0 0.0
        %826 = vmatpush1.xpose.msra.mxu0 0.0
        %827 = vmatprep.mubr.f32.mxu0 0.0
        %828 = vmatmul.mubr.f32.gmra.mrb[0].mxu0 %v759
        %v829 = vpop.f32.mrb[0].mxu0
        %v830 = vadd.f32 0.0, %v829
        %v831 = vpop.f32.mrb[0].mxu0
        %832 = vdwg.mxu0
        %v833 = vsel %vm420, %v830, -inf
        %834 = vmax.xlane.f32.xlu0 %v833
        %v835 = vpop.xlane.xlu0 %834
        %v836 = vsub.f32 %v830, %v835
        %v837 = vmul.f32 %v836, 1.442695
        %v838 = vpow.pop %v837
        %v839 = vsel %vm420, %v838, 0.0
        %840 = vadd.xlane.f32.xlu0 %v839
        %v841 = vpop.xlane.xlu0 %840
        %v842 = vrcp.pop %v841
        %843 = vrot.lane.b32.xlu0 %v407, 48
        %v844 = vpop.permute.xlu0 %843
        %v847 = vsel %vm420, %v838, 0
        %849 = vmatprep.subr.mxu0 0.0
        %850 = vmatpush1.msra.mxu0 %v844
        %851 = vmatprep.subr.mxu0 0.0
        %852 = vmatpush1.msra.mxu0 0.0
        %853 = vmatprep.subr.mxu0 0.0
        %854 = vmatpush1.msra.mxu0 0.0
        %855 = vmatprep.subr.mxu0 0.0
        %856 = vmatpush1.msra.mxu0 0.0
        %857 = vmatprep.subr.mxu0 0.0
        %858 = vmatpush1.msra.mxu0 0.0
        %859 = vmatprep.subr.mxu0 0.0
        %860 = vmatpush1.msra.mxu0 0.0
        %861 = vmatprep.subr.mxu0 0.0
        %862 = vmatpush1.msra.mxu0 0.0
        %863 = vmatprep.subr.mxu0 0.0
        %864 = vmatpush1.msra.mxu0 0.0
        %865 = vmatprep.subr.mxu0 0.0
        %866 = vmatpush1.msra.mxu0 0.0
        %867 = vmatprep.subr.mxu0 0.0
        %868 = vmatpush1.msra.mxu0 0.0
        %869 = vmatprep.subr.mxu0 0.0
        %870 = vmatpush1.msra.mxu0 0.0
        %871 = vmatprep.subr.mxu0 0.0
        %872 = vmatpush1.msra.mxu0 0.0
        %873 = vmatprep.subr.mxu0 0.0
        %874 = vmatpush1.msra.mxu0 0.0
        %875 = vmatprep.subr.mxu0 0.0
        %876 = vmatpush1.msra.mxu0 0.0
        %877 = vmatprep.subr.mxu0 0.0
        %878 = vmatpush1.msra.mxu0 0.0
        %879 = vmatprep.subr.mxu0 0.0
        %880 = vmatpush1.msra.mxu0 0.0
        %881 = vmatprep.subr.mxu0 0.0
        %882 = vmatpush1.msra.mxu0 0.0
        %883 = vmatprep.subr.mxu0 0.0
        %884 = vmatpush1.msra.mxu0 0.0
        %885 = vmatprep.subr.mxu0 0.0
        %886 = vmatpush1.msra.mxu0 0.0
        %887 = vmatprep.subr.mxu0 0.0
        %888 = vmatpush1.msra.mxu0 0.0
        %889 = vmatprep.subr.mxu0 0.0
        %890 = vmatpush1.msra.mxu0 0.0
        %891 = vmatprep.subr.mxu0 0.0
        %892 = vmatpush1.msra.mxu0 0.0
        %893 = vmatprep.subr.mxu0 0.0
        %894 = vmatpush1.msra.mxu0 0.0
        %895 = vmatprep.subr.mxu0 0.0
        %896 = vmatpush1.msra.mxu0 0.0
        %897 = vmatprep.subr.mxu0 0.0
        %898 = vmatpush1.msra.mxu0 0.0
        %899 = vmatprep.subr.mxu0 0.0
        %900 = vmatpush1.msra.mxu0 0.0
        %901 = vmatprep.subr.mxu0 0.0
        %902 = vmatpush1.msra.mxu0 0.0
        %903 = vmatprep.subr.mxu0 0.0
        %904 = vmatpush1.msra.mxu0 0.0
        %905 = vmatprep.subr.mxu0 0.0
        %906 = vmatpush1.msra.mxu0 0.0
        %907 = vmatprep.subr.mxu0 0.0
        %908 = vmatpush1.msra.mxu0 0.0
        %909 = vmatprep.subr.mxu0 0.0
        %910 = vmatpush1.msra.mxu0 0.0
        %911 = vmatprep.subr.mxu0 0.0
        %912 = vmatpush1.msra.mxu0 0.0
        %913 = vmatprep.mubr.f32.mxu0 0.0
        %914 = vmatmul.mubr.f32.gmra.mrb[0].mxu0 %v847
        %v915 = vpop.f32.mrb[0].mxu0
        %v916 = vadd.f32 0.0, %v915
        %v917 = vpop.f32.mrb[0].mxu0
        %918 = vdwg.mxu0
        %v919 = vmul.f32 %v916, %v842
        %921 = vrot.lane.b32.xlu0 %v919, 16
        %v922 = vpop.permute.xlu0 %921
        %vm924 = vcmask 195712
        %925 = vst.msk [vmem:[#allocation2] sm:$0xff] %vm924, %v922
        %926 = vrot.lane.b32.xlu0 %v415, 104
        %v927 = vpop.permute.xlu0 %926
        %928 = vrot.lane.b32.xlu0 %v407, 72
        %v929 = vpop.permute.xlu0 %928
        %v930 = vsel %vm420, %v927, 0
        %v932 = vsel %vm420, %v929, 0
        %934 = vmatprep.subr.mxu0 0.0
        %935 = vmatpush1.xpose.msra.mxu0 %v932
        %936 = vmatprep.subr.mxu0 0.0
        %937 = vmatpush1.xpose.msra.mxu0 0.0
        %938 = vmatprep.subr.mxu0 0.0
        %939 = vmatpush1.xpose.msra.mxu0 0.0
        %940 = vmatprep.subr.mxu0 0.0
        %941 = vmatpush1.xpose.msra.mxu0 0.0
        %942 = vmatprep.subr.mxu0 0.0
        %943 = vmatpush1.xpose.msra.mxu0 0.0
        %944 = vmatprep.subr.mxu0 0.0
        %945 = vmatpush1.xpose.msra.mxu0 0.0
        %946 = vmatprep.subr.mxu0 0.0
        %947 = vmatpush1.xpose.msra.mxu0 0.0
        %948 = vmatprep.subr.mxu0 0.0
        %949 = vmatpush1.xpose.msra.mxu0 0.0
        %950 = vmatprep.subr.mxu0 0.0
        %951 = vmatpush1.xpose.msra.mxu0 0.0
        %952 = vmatprep.subr.mxu0 0.0
        %953 = vmatpush1.xpose.msra.mxu0 0.0
        %954 = vmatprep.subr.mxu0 0.0
        %955 = vmatpush1.xpose.msra.mxu0 0.0
        %956 = vmatprep.subr.mxu0 0.0
        %957 = vmatpush1.xpose.msra.mxu0 0.0
        %958 = vmatprep.subr.mxu0 0.0
        %959 = vmatpush1.xpose.msra.mxu0 0.0
        %960 = vmatprep.subr.mxu0 0.0
        %961 = vmatpush1.xpose.msra.mxu0 0.0
        %962 = vmatprep.subr.mxu0 0.0
        %963 = vmatpush1.xpose.msra.mxu0 0.0
        %964 = vmatprep.subr.mxu0 0.0
        %965 = vmatpush1.xpose.msra.mxu0 0.0
        %966 = vmatprep.subr.mxu0 0.0
        %967 = vmatpush1.xpose.msra.mxu0 0.0
        %968 = vmatprep.subr.mxu0 0.0
        %969 = vmatpush1.xpose.msra.mxu0 0.0
        %970 = vmatprep.subr.mxu0 0.0
        %971 = vmatpush1.xpose.msra.mxu0 0.0
        %972 = vmatprep.subr.mxu0 0.0
        %973 = vmatpush1.xpose.msra.mxu0 0.0
        %974 = vmatprep.subr.mxu0 0.0
        %975 = vmatpush1.xpose.msra.mxu0 0.0
        %976 = vmatprep.subr.mxu0 0.0
        %977 = vmatpush1.xpose.msra.mxu0 0.0
        %978 = vmatprep.subr.mxu0 0.0
        %979 = vmatpush1.xpose.msra.mxu0 0.0
        %980 = vmatprep.subr.mxu0 0.0
        %981 = vmatpush1.xpose.msra.mxu0 0.0
        %982 = vmatprep.subr.mxu0 0.0
        %983 = vmatpush1.xpose.msra.mxu0 0.0
        %984 = vmatprep.subr.mxu0 0.0
        %985 = vmatpush1.xpose.msra.mxu0 0.0
        %986 = vmatprep.subr.mxu0 0.0
        %987 = vmatpush1.xpose.msra.mxu0 0.0
        %988 = vmatprep.subr.mxu0 0.0
        %989 = vmatpush1.xpose.msra.mxu0 0.0
        %990 = vmatprep.subr.mxu0 0.0
        %991 = vmatpush1.xpose.msra.mxu0 0.0
        %992 = vmatprep.subr.mxu0 0.0
        %993 = vmatpush1.xpose.msra.mxu0 0.0
        %994 = vmatprep.subr.mxu0 0.0
        %995 = vmatpush1.xpose.msra.mxu0 0.0
        %996 = vmatprep.subr.mxu0 0.0
        %997 = vmatpush1.xpose.msra.mxu0 0.0
        %998 = vmatprep.mubr.f32.mxu0 0.0
        %999 = vmatmul.mubr.f32.gmra.mrb[0].mxu0 %v930
        %v1000 = vpop.f32.mrb[0].mxu0
        %v1001 = vadd.f32 0.0, %v1000
        %v1002 = vpop.f32.mrb[0].mxu0
        %1003 = vdwg.mxu0
        %v1004 = vsel %vm420, %v1001, -inf
        %1005 = vmax.xlane.f32.xlu0 %v1004
        %v1006 = vpop.xlane.xlu0 %1005
        %v1007 = vsub.f32 %v1001, %v1006
        %v1008 = vmul.f32 %v1007, 1.442695
        %v1009 = vpow.pop %v1008
        %v1010 = vsel %vm420, %v1009, 0.0
        %1011 = vadd.xlane.f32.xlu0 %v1010
        %v1012 = vpop.xlane.xlu0 %1011
        %v1013 = vrcp.pop %v1012
        %1014 = vrot.lane.b32.xlu0 %v407, 40
        %v1015 = vpop.permute.xlu0 %1014
        %v1018 = vsel %vm420, %v1009, 0
        %1020 = vmatprep.subr.mxu0 0.0
        %1021 = vmatpush1.msra.mxu0 %v1015
        %1022 = vmatprep.subr.mxu0 0.0
        %1023 = vmatpush1.msra.mxu0 0.0
        %1024 = vmatprep.subr.mxu0 0.0
        %1025 = vmatpush1.msra.mxu0 0.0
        %1026 = vmatprep.subr.mxu0 0.0
        %1027 = vmatpush1.msra.mxu0 0.0
        %1028 = vmatprep.subr.mxu0 0.0
        %1029 = vmatpush1.msra.mxu0 0.0
        %1030 = vmatprep.subr.mxu0 0.0
        %1031 = vmatpush1.msra.mxu0 0.0
        %1032 = vmatprep.subr.mxu0 0.0
        %1033 = vmatpush1.msra.mxu0 0.0
        %1034 = vmatprep.subr.mxu0 0.0
        %1035 = vmatpush1.msra.mxu0 0.0
        %1036 = vmatprep.subr.mxu0 0.0
        %1037 = vmatpush1.msra.mxu0 0.0
        %1038 = vmatprep.subr.mxu0 0.0
        %1039 = vmatpush1.msra.mxu0 0.0
        %1040 = vmatprep.subr.mxu0 0.0
        %1041 = vmatpush1.msra.mxu0 0.0
        %1042 = vmatprep.subr.mxu0 0.0
        %1043 = vmatpush1.msra.mxu0 0.0
        %1044 = vmatprep.subr.mxu0 0.0
        %1045 = vmatpush1.msra.mxu0 0.0
        %1046 = vmatprep.subr.mxu0 0.0
        %1047 = vmatpush1.msra.mxu0 0.0
        %1048 = vmatprep.subr.mxu0 0.0
        %1049 = vmatpush1.msra.mxu0 0.0
        %1050 = vmatprep.subr.mxu0 0.0
        %1051 = vmatpush1.msra.mxu0 0.0
        %1052 = vmatprep.subr.mxu0 0.0
        %1053 = vmatpush1.msra.mxu0 0.0
        %1054 = vmatprep.subr.mxu0 0.0
        %1055 = vmatpush1.msra.mxu0 0.0
        %1056 = vmatprep.subr.mxu0 0.0
        %1057 = vmatpush1.msra.mxu0 0.0
        %1058 = vmatprep.subr.mxu0 0.0
        %1059 = vmatpush1.msra.mxu0 0.0
        %1060 = vmatprep.subr.mxu0 0.0
        %1061 = vmatpush1.msra.mxu0 0.0
        %1062 = vmatprep.subr.mxu0 0.0
        %1063 = vmatpush1.msra.mxu0 0.0
        %1064 = vmatprep.subr.mxu0 0.0
        %1065 = vmatpush1.msra.mxu0 0.0
        %1066 = vmatprep.subr.mxu0 0.0
        %1067 = vmatpush1.msra.mxu0 0.0
        %1068 = vmatprep.subr.mxu0 0.0
        %1069 = vmatpush1.msra.mxu0 0.0
        %1070 = vmatprep.subr.mxu0 0.0
        %1071 = vmatpush1.msra.mxu0 0.0
        %1072 = vmatprep.subr.mxu0 0.0
        %1073 = vmatpush1.msra.mxu0 0.0
        %1074 = vmatprep.subr.mxu0 0.0
        %1075 = vmatpush1.msra.mxu0 0.0
        %1076 = vmatprep.subr.mxu0 0.0
        %1077 = vmatpush1.msra.mxu0 0.0
        %1078 = vmatprep.subr.mxu0 0.0
        %1079 = vmatpush1.msra.mxu0 0.0
        %1080 = vmatprep.subr.mxu0 0.0
        %1081 = vmatpush1.msra.mxu0 0.0
        %1082 = vmatprep.subr.mxu0 0.0
        %1083 = vmatpush1.msra.mxu0 0.0
        %1084 = vmatprep.mubr.f32.mxu0 0.0
        %1085 = vmatmul.mubr.f32.gmra.mrb[0].mxu0 %v1018
        %v1086 = vpop.f32.mrb[0].mxu0
        %v1087 = vadd.f32 0.0, %v1086
        %v1088 = vpop.f32.mrb[0].mxu0
        %1089 = vdwg.mxu0
        %v1090 = vmul.f32 %v1087, %v1013
        %1092 = vrot.lane.b32.xlu0 %v1090, 24
        %v1093 = vpop.permute.xlu0 %1092
        %vm1095 = vcmask 261312
        %1096 = vst.msk [vmem:[#allocation2] sm:$0xff] %vm1095, %v1093
        %1098 = vrot.lane.b32.xlu0 %v412, 96
        %v1099 = vpop.permute.xlu0 %1098
        %v1101 = vsel %vm420, %v416, 0
        %v1103 = vsel %vm420, %v1099, 0
        %1105 = vmatprep.subr.mxu0 0.0
        %1106 = vmatpush1.xpose.msra.mxu0 %v1103
        %1107 = vmatprep.subr.mxu0 0.0
        %1108 = vmatpush1.xpose.msra.mxu0 0.0
        %1109 = vmatprep.subr.mxu0 0.0
        %1110 = vmatpush1.xpose.msra.mxu0 0.0
        %1111 = vmatprep.subr.mxu0 0.0
        %1112 = vmatpush1.xpose.msra.mxu0 0.0
        %1113 = vmatprep.subr.mxu0 0.0
        %1114 = vmatpush1.xpose.msra.mxu0 0.0
        %1115 = vmatprep.subr.mxu0 0.0
        %1116 = vmatpush1.xpose.msra.mxu0 0.0
        %1117 = vmatprep.subr.mxu0 0.0
        %1118 = vmatpush1.xpose.msra.mxu0 0.0
        %1119 = vmatprep.subr.mxu0 0.0
        %1120 = vmatpush1.xpose.msra.mxu0 0.0
        %1121 = vmatprep.subr.mxu0 0.0
        %1122 = vmatpush1.xpose.msra.mxu0 0.0
        %1123 = vmatprep.subr.mxu0 0.0
        %1124 = vmatpush1.xpose.msra.mxu0 0.0
        %1125 = vmatprep.subr.mxu0 0.0
        %1126 = vmatpush1.xpose.msra.mxu0 0.0
        %1127 = vmatprep.subr.mxu0 0.0
        %1128 = vmatpush1.xpose.msra.mxu0 0.0
        %1129 = vmatprep.subr.mxu0 0.0
        %1130 = vmatpush1.xpose.msra.mxu0 0.0
        %1131 = vmatprep.subr.mxu0 0.0
        %1132 = vmatpush1.xpose.msra.mxu0 0.0
        %1133 = vmatprep.subr.mxu0 0.0
        %1134 = vmatpush1.xpose.msra.mxu0 0.0
        %1135 = vmatprep.subr.mxu0 0.0
        %1136 = vmatpush1.xpose.msra.mxu0 0.0
        %1137 = vmatprep.subr.mxu0 0.0
        %1138 = vmatpush1.xpose.msra.mxu0 0.0
        %1139 = vmatprep.subr.mxu0 0.0
        %1140 = vmatpush1.xpose.msra.mxu0 0.0
        %1141 = vmatprep.subr.mxu0 0.0
        %1142 = vmatpush1.xpose.msra.mxu0 0.0
        %1143 = vmatprep.subr.mxu0 0.0
        %1144 = vmatpush1.xpose.msra.mxu0 0.0
        %1145 = vmatprep.subr.mxu0 0.0
        %1146 = vmatpush1.xpose.msra.mxu0 0.0
        %1147 = vmatprep.subr.mxu0 0.0
        %1148 = vmatpush1.xpose.msra.mxu0 0.0
        %1149 = vmatprep.subr.mxu0 0.0
        %1150 = vmatpush1.xpose.msra.mxu0 0.0
        %1151 = vmatprep.subr.mxu0 0.0
        %1152 = vmatpush1.xpose.msra.mxu0 0.0
        %1153 = vmatprep.subr.mxu0 0.0
        %1154 = vmatpush1.xpose.msra.mxu0 0.0
        %1155 = vmatprep.subr.mxu0 0.0
        %1156 = vmatpush1.xpose.msra.mxu0 0.0
        %1157 = vmatprep.subr.mxu0 0.0
        %1158 = vmatpush1.xpose.msra.mxu0 0.0
        %1159 = vmatprep.subr.mxu0 0.0
        %1160 = vmatpush1.xpose.msra.mxu0 0.0
        %1161 = vmatprep.subr.mxu0 0.0
        %1162 = vmatpush1.xpose.msra.mxu0 0.0
        %1163 = vmatprep.subr.mxu0 0.0
        %1164 = vmatpush1.xpose.msra.mxu0 0.0
        %1165 = vmatprep.subr.mxu0 0.0
        %1166 = vmatpush1.xpose.msra.mxu0 0.0
        %1167 = vmatprep.subr.mxu0 0.0
        %1168 = vmatpush1.xpose.msra.mxu0 0.0
        %1169 = vmatprep.mubr.f32.mxu0 0.0
        %1170 = vmatmul.mubr.f32.gmra.mrb[0].mxu0 %v1101
        %v1171 = vpop.f32.mrb[0].mxu0
        %v1172 = vadd.f32 0.0, %v1171
        %v1173 = vpop.f32.mrb[0].mxu0
        %1174 = vdwg.mxu0
        %v1175 = vsel %vm420, %v1172, -inf
        %1176 = vmax.xlane.f32.xlu0 %v1175
        %v1177 = vpop.xlane.xlu0 %1176
        %v1178 = vsub.f32 %v1172, %v1177
        %v1179 = vmul.f32 %v1178, 1.442695
        %v1180 = vpow.pop %v1179
        %v1181 = vsel %vm420, %v1180, 0.0
        %1182 = vadd.xlane.f32.xlu0 %v1181
        %v1183 = vpop.xlane.xlu0 %1182
        %v1184 = vrcp.pop %v1183
        %1185 = vrot.lane.b32.xlu0 %v412, 64
        %v1186 = vpop.permute.xlu0 %1185
        %v1189 = vsel %vm420, %v1180, 0
        %1191 = vmatprep.subr.mxu0 0.0
        %1192 = vmatpush1.msra.mxu0 %v1186
        %1193 = vmatprep.subr.mxu0 0.0
        %1194 = vmatpush1.msra.mxu0 0.0
        %1195 = vmatprep.subr.mxu0 0.0
        %1196 = vmatpush1.msra.mxu0 0.0
        %1197 = vmatprep.subr.mxu0 0.0
        %1198 = vmatpush1.msra.mxu0 0.0
        %1199 = vmatprep.subr.mxu0 0.0
        %1200 = vmatpush1.msra.mxu0 0.0
        %1201 = vmatprep.subr.mxu0 0.0
        %1202 = vmatpush1.msra.mxu0 0.0
        %1203 = vmatprep.subr.mxu0 0.0
        %1204 = vmatpush1.msra.mxu0 0.0
        %1205 = vmatprep.subr.mxu0 0.0
        %1206 = vmatpush1.msra.mxu0 0.0
        %1207 = vmatprep.subr.mxu0 0.0
        %1208 = vmatpush1.msra.mxu0 0.0
        %1209 = vmatprep.subr.mxu0 0.0
        %1210 = vmatpush1.msra.mxu0 0.0
        %1211 = vmatprep.subr.mxu0 0.0
        %1212 = vmatpush1.msra.mxu0 0.0
        %1213 = vmatprep.subr.mxu0 0.0
        %1214 = vmatpush1.msra.mxu0 0.0
        %1215 = vmatprep.subr.mxu0 0.0
        %1216 = vmatpush1.msra.mxu0 0.0
        %1217 = vmatprep.subr.mxu0 0.0
        %1218 = vmatpush1.msra.mxu0 0.0
        %1219 = vmatprep.subr.mxu0 0.0
        %1220 = vmatpush1.msra.mxu0 0.0
        %1221 = vmatprep.subr.mxu0 0.0
        %1222 = vmatpush1.msra.mxu0 0.0
        %1223 = vmatprep.subr.mxu0 0.0
        %1224 = vmatpush1.msra.mxu0 0.0
        %1225 = vmatprep.subr.mxu0 0.0
        %1226 = vmatpush1.msra.mxu0 0.0
        %1227 = vmatprep.subr.mxu0 0.0
        %1228 = vmatpush1.msra.mxu0 0.0
        %1229 = vmatprep.subr.mxu0 0.0
        %1230 = vmatpush1.msra.mxu0 0.0
        %1231 = vmatprep.subr.mxu0 0.0
        %1232 = vmatpush1.msra.mxu0 0.0
        %1233 = vmatprep.subr.mxu0 0.0
        %1234 = vmatpush1.msra.mxu0 0.0
        %1235 = vmatprep.subr.mxu0 0.0
        %1236 = vmatpush1.msra.mxu0 0.0
        %1237 = vmatprep.subr.mxu0 0.0
        %1238 = vmatpush1.msra.mxu0 0.0
        %1239 = vmatprep.subr.mxu0 0.0
        %1240 = vmatpush1.msra.mxu0 0.0
        %1241 = vmatprep.subr.mxu0 0.0
        %1242 = vmatpush1.msra.mxu0 0.0
        %1243 = vmatprep.subr.mxu0 0.0
        %1244 = vmatpush1.msra.mxu0 0.0
        %1245 = vmatprep.subr.mxu0 0.0
        %1246 = vmatpush1.msra.mxu0 0.0
        %1247 = vmatprep.subr.mxu0 0.0
        %1248 = vmatpush1.msra.mxu0 0.0
        %1249 = vmatprep.subr.mxu0 0.0
        %1250 = vmatpush1.msra.mxu0 0.0
        %1251 = vmatprep.subr.mxu0 0.0
        %1252 = vmatpush1.msra.mxu0 0.0
        %1253 = vmatprep.subr.mxu0 0.0
        %1254 = vmatpush1.msra.mxu0 0.0
        %1255 = vmatprep.mubr.f32.mxu0 0.0
        %1256 = vmatmul.mubr.f32.gmra.mrb[0].mxu0 %v1189
        %v1257 = vpop.f32.mrb[0].mxu0
        %v1258 = vadd.f32 0.0, %v1257
        %v1259 = vpop.f32.mrb[0].mxu0
        %1260 = vdwg.mxu0
        %v1261 = vmul.f32 %v1258, %v1184
        %1262 = vst.msk [vmem:[#allocation2 + $0x8] sm:$0xff] %vm420, %v1261
        %1263 = vrot.lane.b32.xlu0 %v416, 120
        %v1264 = vpop.permute.xlu0 %1263
        %1265 = vrot.lane.b32.xlu0 %v412, 88
        %v1266 = vpop.permute.xlu0 %1265
        %v1267 = vsel %vm420, %v1264, 0
        %v1269 = vsel %vm420, %v1266, 0
        %1271 = vmatprep.subr.mxu0 0.0
        %1272 = vmatpush1.xpose.msra.mxu0 %v1269
        %1273 = vmatprep.subr.mxu0 0.0
        %1274 = vmatpush1.xpose.msra.mxu0 0.0
        %1275 = vmatprep.subr.mxu0 0.0
        %1276 = vmatpush1.xpose.msra.mxu0 0.0
        %1277 = vmatprep.subr.mxu0 0.0
        %1278 = vmatpush1.xpose.msra.mxu0 0.0
        %1279 = vmatprep.subr.mxu0 0.0
        %1280 = vmatpush1.xpose.msra.mxu0 0.0
        %1281 = vmatprep.subr.mxu0 0.0
        %1282 = vmatpush1.xpose.msra.mxu0 0.0
        %1283 = vmatprep.subr.mxu0 0.0
        %1284 = vmatpush1.xpose.msra.mxu0 0.0
        %1285 = vmatprep.subr.mxu0 0.0
        %1286 = vmatpush1.xpose.msra.mxu0 0.0
        %1287 = vmatprep.subr.mxu0 0.0
        %1288 = vmatpush1.xpose.msra.mxu0 0.0
        %1289 = vmatprep.subr.mxu0 0.0
        %1290 = vmatpush1.xpose.msra.mxu0 0.0
        %1291 = vmatprep.subr.mxu0 0.0
        %1292 = vmatpush1.xpose.msra.mxu0 0.0
        %1293 = vmatprep.subr.mxu0 0.0
        %1294 = vmatpush1.xpose.msra.mxu0 0.0
        %1295 = vmatprep.subr.mxu0 0.0
        %1296 = vmatpush1.xpose.msra.mxu0 0.0
        %1297 = vmatprep.subr.mxu0 0.0
        %1298 = vmatpush1.xpose.msra.mxu0 0.0
        %1299 = vmatprep.subr.mxu0 0.0
        %1300 = vmatpush1.xpose.msra.mxu0 0.0
        %1301 = vmatprep.subr.mxu0 0.0
        %1302 = vmatpush1.xpose.msra.mxu0 0.0
        %1303 = vmatprep.subr.mxu0 0.0
        %1304 = vmatpush1.xpose.msra.mxu0 0.0
        %1305 = vmatprep.subr.mxu0 0.0
        %1306 = vmatpush1.xpose.msra.mxu0 0.0
        %1307 = vmatprep.subr.mxu0 0.0
        %1308 = vmatpush1.xpose.msra.mxu0 0.0
        %1309 = vmatprep.subr.mxu0 0.0
        %1310 = vmatpush1.xpose.msra.mxu0 0.0
        %1311 = vmatprep.subr.mxu0 0.0
        %1312 = vmatpush1.xpose.msra.mxu0 0.0
        %1313 = vmatprep.subr.mxu0 0.0
        %1314 = vmatpush1.xpose.msra.mxu0 0.0
        %1315 = vmatprep.subr.mxu0 0.0
        %1316 = vmatpush1.xpose.msra.mxu0 0.0
        %1317 = vmatprep.subr.mxu0 0.0
        %1318 = vmatpush1.xpose.msra.mxu0 0.0
        %1319 = vmatprep.subr.mxu0 0.0
        %1320 = vmatpush1.xpose.msra.mxu0 0.0
        %1321 = vmatprep.subr.mxu0 0.0
        %1322 = vmatpush1.xpose.msra.mxu0 0.0
        %1323 = vmatprep.subr.mxu0 0.0
        %1324 = vmatpush1.xpose.msra.mxu0 0.0
        %1325 = vmatprep.subr.mxu0 0.0
        %1326 = vmatpush1.xpose.msra.mxu0 0.0
        %1327 = vmatprep.subr.mxu0 0.0
        %1328 = vmatpush1.xpose.msra.mxu0 0.0
        %1329 = vmatprep.subr.mxu0 0.0
        %1330 = vmatpush1.xpose.msra.mxu0 0.0
        %1331 = vmatprep.subr.mxu0 0.0
        %1332 = vmatpush1.xpose.msra.mxu0 0.0
        %1333 = vmatprep.subr.mxu0 0.0
        %1334 = vmatpush1.xpose.msra.mxu0 0.0
        %1335 = vmatprep.mubr.f32.mxu0 0.0
        %1336 = vmatmul.mubr.f32.gmra.mrb[0].mxu0 %v1267
        %v1337 = vpop.f32.mrb[0].mxu0
        %v1338 = vadd.f32 0.0, %v1337
        %v1339 = vpop.f32.mrb[0].mxu0
        %1340 = vdwg.mxu0
        %v1341 = vsel %vm420, %v1338, -inf
        %1342 = vmax.xlane.f32.xlu0 %v1341
        %v1343 = vpop.xlane.xlu0 %1342
        %v1344 = vsub.f32 %v1338, %v1343
        %v1345 = vmul.f32 %v1344, 1.442695
        %v1346 = vpow.pop %v1345
        %v1347 = vsel %vm420, %v1346, 0.0
        %1348 = vadd.xlane.f32.xlu0 %v1347
        %v1349 = vpop.xlane.xlu0 %1348
        %v1350 = vrcp.pop %v1349
        %1351 = vrot.lane.b32.xlu0 %v412, 56
        %v1352 = vpop.permute.xlu0 %1351
        %v1355 = vsel %vm420, %v1346, 0
        %1357 = vmatprep.subr.mxu0 0.0
        %1358 = vmatpush1.msra.mxu0 %v1352
        %1359 = vmatprep.subr.mxu0 0.0
        %1360 = vmatpush1.msra.mxu0 0.0
        %1361 = vmatprep.subr.mxu0 0.0
        %1362 = vmatpush1.msra.mxu0 0.0
        %1363 = vmatprep.subr.mxu0 0.0
        %1364 = vmatpush1.msra.mxu0 0.0
        %1365 = vmatprep.subr.mxu0 0.0
        %1366 = vmatpush1.msra.mxu0 0.0
        %1367 = vmatprep.subr.mxu0 0.0
        %1368 = vmatpush1.msra.mxu0 0.0
        %1369 = vmatprep.subr.mxu0 0.0
        %1370 = vmatpush1.msra.mxu0 0.0
        %1371 = vmatprep.subr.mxu0 0.0
        %1372 = vmatpush1.msra.mxu0 0.0
        %1373 = vmatprep.subr.mxu0 0.0
        %1374 = vmatpush1.msra.mxu0 0.0
        %1375 = vmatprep.subr.mxu0 0.0
        %1376 = vmatpush1.msra.mxu0 0.0
        %1377 = vmatprep.subr.mxu0 0.0
        %1378 = vmatpush1.msra.mxu0 0.0
        %1379 = vmatprep.subr.mxu0 0.0
        %1380 = vmatpush1.msra.mxu0 0.0
        %1381 = vmatprep.subr.mxu0 0.0
        %1382 = vmatpush1.msra.mxu0 0.0
        %1383 = vmatprep.subr.mxu0 0.0
        %1384 = vmatpush1.msra.mxu0 0.0
        %1385 = vmatprep.subr.mxu0 0.0
        %1386 = vmatpush1.msra.mxu0 0.0
        %1387 = vmatprep.subr.mxu0 0.0
        %1388 = vmatpush1.msra.mxu0 0.0
        %1389 = vmatprep.subr.mxu0 0.0
        %1390 = vmatpush1.msra.mxu0 0.0
        %1391 = vmatprep.subr.mxu0 0.0
        %1392 = vmatpush1.msra.mxu0 0.0
        %1393 = vmatprep.subr.mxu0 0.0
        %1394 = vmatpush1.msra.mxu0 0.0
        %1395 = vmatprep.subr.mxu0 0.0
        %1396 = vmatpush1.msra.mxu0 0.0
        %1397 = vmatprep.subr.mxu0 0.0
        %1398 = vmatpush1.msra.mxu0 0.0
        %1399 = vmatprep.subr.mxu0 0.0
        %1400 = vmatpush1.msra.mxu0 0.0
        %1401 = vmatprep.subr.mxu0 0.0
        %1402 = vmatpush1.msra.mxu0 0.0
        %1403 = vmatprep.subr.mxu0 0.0
        %1404 = vmatpush1.msra.mxu0 0.0
        %1405 = vmatprep.subr.mxu0 0.0
        %1406 = vmatpush1.msra.mxu0 0.0
        %1407 = vmatprep.subr.mxu0 0.0
        %1408 = vmatpush1.msra.mxu0 0.0
        %1409 = vmatprep.subr.mxu0 0.0
        %1410 = vmatpush1.msra.mxu0 0.0
        %1411 = vmatprep.subr.mxu0 0.0
        %1412 = vmatpush1.msra.mxu0 0.0
        %1413 = vmatprep.subr.mxu0 0.0
        %1414 = vmatpush1.msra.mxu0 0.0
        %1415 = vmatprep.subr.mxu0 0.0
        %1416 = vmatpush1.msra.mxu0 0.0
        %1417 = vmatprep.subr.mxu0 0.0
        %1418 = vmatpush1.msra.mxu0 0.0
        %1419 = vmatprep.subr.mxu0 0.0
        %1420 = vmatpush1.msra.mxu0 0.0
        %1421 = vmatprep.mubr.f32.mxu0 0.0
        %1422 = vmatmul.mubr.f32.gmra.mrb[0].mxu0 %v1355
        %v1423 = vpop.f32.mrb[0].mxu0
        %v1424 = vadd.f32 0.0, %v1423
        %v1425 = vpop.f32.mrb[0].mxu0
        %1426 = vdwg.mxu0
        %v1427 = vmul.f32 %v1424, %v1350
        %1429 = vrot.lane.b32.xlu0 %v1427, 8
        %v1430 = vpop.permute.xlu0 %1429
        %1432 = vst.msk [vmem:[#allocation2 + $0x8] sm:$0xff] %vm753, %v1430
        %1433 = vrot.lane.b32.xlu0 %v416, 112
        %v1434 = vpop.permute.xlu0 %1433
        %1435 = vrot.lane.b32.xlu0 %v412, 80
        %v1436 = vpop.permute.xlu0 %1435
        %v1437 = vsel %vm420, %v1434, 0
        %v1439 = vsel %vm420, %v1436, 0
        %1441 = vmatprep.subr.mxu0 0.0
        %1442 = vmatpush1.xpose.msra.mxu0 %v1439
        %1443 = vmatprep.subr.mxu0 0.0
        %1444 = vmatpush1.xpose.msra.mxu0 0.0
        %1445 = vmatprep.subr.mxu0 0.0
        %1446 = vmatpush1.xpose.msra.mxu0 0.0
        %1447 = vmatprep.subr.mxu0 0.0
        %1448 = vmatpush1.xpose.msra.mxu0 0.0
        %1449 = vmatprep.subr.mxu0 0.0
        %1450 = vmatpush1.xpose.msra.mxu0 0.0
        %1451 = vmatprep.subr.mxu0 0.0
        %1452 = vmatpush1.xpose.msra.mxu0 0.0
        %1453 = vmatprep.subr.mxu0 0.0
        %1454 = vmatpush1.xpose.msra.mxu0 0.0
        %1455 = vmatprep.subr.mxu0 0.0
        %1456 = vmatpush1.xpose.msra.mxu0 0.0
        %1457 = vmatprep.subr.mxu0 0.0
        %1458 = vmatpush1.xpose.msra.mxu0 0.0
        %1459 = vmatprep.subr.mxu0 0.0
        %1460 = vmatpush1.xpose.msra.mxu0 0.0
        %1461 = vmatprep.subr.mxu0 0.0
        %1462 = vmatpush1.xpose.msra.mxu0 0.0
        %1463 = vmatprep.subr.mxu0 0.0
        %1464 = vmatpush1.xpose.msra.mxu0 0.0
        %1465 = vmatprep.subr.mxu0 0.0
        %1466 = vmatpush1.xpose.msra.mxu0 0.0
        %1467 = vmatprep.subr.mxu0 0.0
        %1468 = vmatpush1.xpose.msra.mxu0 0.0
        %1469 = vmatprep.subr.mxu0 0.0
        %1470 = vmatpush1.xpose.msra.mxu0 0.0
        %1471 = vmatprep.subr.mxu0 0.0
        %1472 = vmatpush1.xpose.msra.mxu0 0.0
        %1473 = vmatprep.subr.mxu0 0.0
        %1474 = vmatpush1.xpose.msra.mxu0 0.0
        %1475 = vmatprep.subr.mxu0 0.0
        %1476 = vmatpush1.xpose.msra.mxu0 0.0
        %1477 = vmatprep.subr.mxu0 0.0
        %1478 = vmatpush1.xpose.msra.mxu0 0.0
        %1479 = vmatprep.subr.mxu0 0.0
        %1480 = vmatpush1.xpose.msra.mxu0 0.0
        %1481 = vmatprep.subr.mxu0 0.0
        %1482 = vmatpush1.xpose.msra.mxu0 0.0
        %1483 = vmatprep.subr.mxu0 0.0
        %1484 = vmatpush1.xpose.msra.mxu0 0.0
        %1485 = vmatprep.subr.mxu0 0.0
        %1486 = vmatpush1.xpose.msra.mxu0 0.0
        %1487 = vmatprep.subr.mxu0 0.0
        %1488 = vmatpush1.xpose.msra.mxu0 0.0
        %1489 = vmatprep.subr.mxu0 0.0
        %1490 = vmatpush1.xpose.msra.mxu0 0.0
        %1491 = vmatprep.subr.mxu0 0.0
        %1492 = vmatpush1.xpose.msra.mxu0 0.0
        %1493 = vmatprep.subr.mxu0 0.0
        %1494 = vmatpush1.xpose.msra.mxu0 0.0
        %1495 = vmatprep.subr.mxu0 0.0
        %1496 = vmatpush1.xpose.msra.mxu0 0.0
        %1497 = vmatprep.subr.mxu0 0.0
        %1498 = vmatpush1.xpose.msra.mxu0 0.0
        %1499 = vmatprep.subr.mxu0 0.0
        %1500 = vmatpush1.xpose.msra.mxu0 0.0
        %1501 = vmatprep.subr.mxu0 0.0
        %1502 = vmatpush1.xpose.msra.mxu0 0.0
        %1503 = vmatprep.subr.mxu0 0.0
        %1504 = vmatpush1.xpose.msra.mxu0 0.0
        %1505 = vmatprep.mubr.f32.mxu0 0.0
        %1506 = vmatmul.mubr.f32.gmra.mrb[0].mxu0 %v1437
        %v1507 = vpop.f32.mrb[0].mxu0
        %v1508 = vadd.f32 0.0, %v1507
        %v1509 = vpop.f32.mrb[0].mxu0
        %1510 = vdwg.mxu0
        %v1511 = vsel %vm420, %v1508, -inf
        %1512 = vmax.xlane.f32.xlu0 %v1511
        %v1513 = vpop.xlane.xlu0 %1512
        %v1514 = vsub.f32 %v1508, %v1513
        %v1515 = vmul.f32 %v1514, 1.442695
        %v1516 = vpow.pop %v1515
        %v1517 = vsel %vm420, %v1516, 0.0
        %1518 = vadd.xlane.f32.xlu0 %v1517
        %v1519 = vpop.xlane.xlu0 %1518
        %v1520 = vrcp.pop %v1519
        %1521 = vrot.lane.b32.xlu0 %v412, 48
        %v1522 = vpop.permute.xlu0 %1521
        %v1525 = vsel %vm420, %v1516, 0
        %1527 = vmatprep.subr.mxu0 0.0
        %1528 = vmatpush1.msra.mxu0 %v1522
        %1529 = vmatprep.subr.mxu0 0.0
        %1530 = vmatpush1.msra.mxu0 0.0
        %1531 = vmatprep.subr.mxu0 0.0
        %1532 = vmatpush1.msra.mxu0 0.0
        %1533 = vmatprep.subr.mxu0 0.0
        %1534 = vmatpush1.msra.mxu0 0.0
        %1535 = vmatprep.subr.mxu0 0.0
        %1536 = vmatpush1.msra.mxu0 0.0
        %1537 = vmatprep.subr.mxu0 0.0
        %1538 = vmatpush1.msra.mxu0 0.0
        %1539 = vmatprep.subr.mxu0 0.0
        %1540 = vmatpush1.msra.mxu0 0.0
        %1541 = vmatprep.subr.mxu0 0.0
        %1542 = vmatpush1.msra.mxu0 0.0
        %1543 = vmatprep.subr.mxu0 0.0
        %1544 = vmatpush1.msra.mxu0 0.0
        %1545 = vmatprep.subr.mxu0 0.0
        %1546 = vmatpush1.msra.mxu0 0.0
        %1547 = vmatprep.subr.mxu0 0.0
        %1548 = vmatpush1.msra.mxu0 0.0
        %1549 = vmatprep.subr.mxu0 0.0
        %1550 = vmatpush1.msra.mxu0 0.0
        %1551 = vmatprep.subr.mxu0 0.0
        %1552 = vmatpush1.msra.mxu0 0.0
        %1553 = vmatprep.subr.mxu0 0.0
        %1554 = vmatpush1.msra.mxu0 0.0
        %1555 = vmatprep.subr.mxu0 0.0
        %1556 = vmatpush1.msra.mxu0 0.0
        %1557 = vmatprep.subr.mxu0 0.0
        %1558 = vmatpush1.msra.mxu0 0.0
        %1559 = vmatprep.subr.mxu0 0.0
        %1560 = vmatpush1.msra.mxu0 0.0
        %1561 = vmatprep.subr.mxu0 0.0
        %1562 = vmatpush1.msra.mxu0 0.0
        %1563 = vmatprep.subr.mxu0 0.0
        %1564 = vmatpush1.msra.mxu0 0.0
        %1565 = vmatprep.subr.mxu0 0.0
        %1566 = vmatpush1.msra.mxu0 0.0
        %1567 = vmatprep.subr.mxu0 0.0
        %1568 = vmatpush1.msra.mxu0 0.0
        %1569 = vmatprep.subr.mxu0 0.0
        %1570 = vmatpush1.msra.mxu0 0.0
        %1571 = vmatprep.subr.mxu0 0.0
        %1572 = vmatpush1.msra.mxu0 0.0
        %1573 = vmatprep.subr.mxu0 0.0
        %1574 = vmatpush1.msra.mxu0 0.0
        %1575 = vmatprep.subr.mxu0 0.0
        %1576 = vmatpush1.msra.mxu0 0.0
        %1577 = vmatprep.subr.mxu0 0.0
        %1578 = vmatpush1.msra.mxu0 0.0
        %1579 = vmatprep.subr.mxu0 0.0
        %1580 = vmatpush1.msra.mxu0 0.0
        %1581 = vmatprep.subr.mxu0 0.0
        %1582 = vmatpush1.msra.mxu0 0.0
        %1583 = vmatprep.subr.mxu0 0.0
        %1584 = vmatpush1.msra.mxu0 0.0
        %1585 = vmatprep.subr.mxu0 0.0
        %1586 = vmatpush1.msra.mxu0 0.0
        %1587 = vmatprep.subr.mxu0 0.0
        %1588 = vmatpush1.msra.mxu0 0.0
        %1589 = vmatprep.subr.mxu0 0.0
        %1590 = vmatpush1.msra.mxu0 0.0
        %1591 = vmatprep.mubr.f32.mxu0 0.0
        %1592 = vmatmul.mubr.f32.gmra.mrb[0].mxu0 %v1525
        %v1593 = vpop.f32.mrb[0].mxu0
        %v1594 = vadd.f32 0.0, %v1593
        %v1595 = vpop.f32.mrb[0].mxu0
        %1596 = vdwg.mxu0
        %v1597 = vmul.f32 %v1594, %v1520
        %1599 = vrot.lane.b32.xlu0 %v1597, 16
        %v1600 = vpop.permute.xlu0 %1599
        %1602 = vst.msk [vmem:[#allocation2 + $0x8] sm:$0xff] %vm924, %v1600
        %1603 = vrot.lane.b32.xlu0 %v416, 104
        %v1604 = vpop.permute.xlu0 %1603
        %1605 = vrot.lane.b32.xlu0 %v412, 72
        %v1606 = vpop.permute.xlu0 %1605
        %v1607 = vsel %vm420, %v1604, 0
        %v1609 = vsel %vm420, %v1606, 0
        %1611 = vmatprep.subr.mxu0 0.0
        %1612 = vmatpush1.xpose.msra.mxu0 %v1609
        %1613 = vmatprep.subr.mxu0 0.0
        %1614 = vmatpush1.xpose.msra.mxu0 0.0
        %1615 = vmatprep.subr.mxu0 0.0
        %1616 = vmatpush1.xpose.msra.mxu0 0.0
        %1617 = vmatprep.subr.mxu0 0.0
        %1618 = vmatpush1.xpose.msra.mxu0 0.0
        %1619 = vmatprep.subr.mxu0 0.0
        %1620 = vmatpush1.xpose.msra.mxu0 0.0
        %1621 = vmatprep.subr.mxu0 0.0
        %1622 = vmatpush1.xpose.msra.mxu0 0.0
        %1623 = vmatprep.subr.mxu0 0.0
        %1624 = vmatpush1.xpose.msra.mxu0 0.0
        %1625 = vmatprep.subr.mxu0 0.0
        %1626 = vmatpush1.xpose.msra.mxu0 0.0
        %1627 = vmatprep.subr.mxu0 0.0
        %1628 = vmatpush1.xpose.msra.mxu0 0.0
        %1629 = vmatprep.subr.mxu0 0.0
        %1630 = vmatpush1.xpose.msra.mxu0 0.0
        %1631 = vmatprep.subr.mxu0 0.0
        %1632 = vmatpush1.xpose.msra.mxu0 0.0
        %1633 = vmatprep.subr.mxu0 0.0
        %1634 = vmatpush1.xpose.msra.mxu0 0.0
        %1635 = vmatprep.subr.mxu0 0.0
        %1636 = vmatpush1.xpose.msra.mxu0 0.0
        %1637 = vmatprep.subr.mxu0 0.0
        %1638 = vmatpush1.xpose.msra.mxu0 0.0
        %1639 = vmatprep.subr.mxu0 0.0
        %1640 = vmatpush1.xpose.msra.mxu0 0.0
        %1641 = vmatprep.subr.mxu0 0.0
        %1642 = vmatpush1.xpose.msra.mxu0 0.0
        %1643 = vmatprep.subr.mxu0 0.0
        %1644 = vmatpush1.xpose.msra.mxu0 0.0
        %1645 = vmatprep.subr.mxu0 0.0
        %1646 = vmatpush1.xpose.msra.mxu0 0.0
        %1647 = vmatprep.subr.mxu0 0.0
        %1648 = vmatpush1.xpose.msra.mxu0 0.0
        %1649 = vmatprep.subr.mxu0 0.0
        %1650 = vmatpush1.xpose.msra.mxu0 0.0
        %1651 = vmatprep.subr.mxu0 0.0
        %1652 = vmatpush1.xpose.msra.mxu0 0.0
        %1653 = vmatprep.subr.mxu0 0.0
        %1654 = vmatpush1.xpose.msra.mxu0 0.0
        %1655 = vmatprep.subr.mxu0 0.0
        %1656 = vmatpush1.xpose.msra.mxu0 0.0
        %1657 = vmatprep.subr.mxu0 0.0
        %1658 = vmatpush1.xpose.msra.mxu0 0.0
        %1659 = vmatprep.subr.mxu0 0.0
        %1660 = vmatpush1.xpose.msra.mxu0 0.0
        %1661 = vmatprep.subr.mxu0 0.0
        %1662 = vmatpush1.xpose.msra.mxu0 0.0
        %1663 = vmatprep.subr.mxu0 0.0
        %1664 = vmatpush1.xpose.msra.mxu0 0.0
        %1665 = vmatprep.subr.mxu0 0.0
        %1666 = vmatpush1.xpose.msra.mxu0 0.0
        %1667 = vmatprep.subr.mxu0 0.0
        %1668 = vmatpush1.xpose.msra.mxu0 0.0
        %1669 = vmatprep.subr.mxu0 0.0
        %1670 = vmatpush1.xpose.msra.mxu0 0.0
        %1671 = vmatprep.subr.mxu0 0.0
        %1672 = vmatpush1.xpose.msra.mxu0 0.0
        %1673 = vmatprep.subr.mxu0 0.0
        %1674 = vmatpush1.xpose.msra.mxu0 0.0
        %1675 = vmatprep.mubr.f32.mxu0 0.0
        %1676 = vmatmul.mubr.f32.gmra.mrb[0].mxu0 %v1607
        %v1677 = vpop.f32.mrb[0].mxu0
        %v1678 = vadd.f32 0.0, %v1677
        %v1679 = vpop.f32.mrb[0].mxu0
        %1680 = vdwg.mxu0
        %v1681 = vsel %vm420, %v1678, -inf
        %1682 = vmax.xlane.f32.xlu0 %v1681
        %v1683 = vpop.xlane.xlu0 %1682
        %v1684 = vsub.f32 %v1678, %v1683
        %v1685 = vmul.f32 %v1684, 1.442695
        %v1686 = vpow.pop %v1685
        %v1687 = vsel %vm420, %v1686, 0.0
        %1688 = vadd.xlane.f32.xlu0 %v1687
        %v1689 = vpop.xlane.xlu0 %1688
        %v1690 = vrcp.pop %v1689
        %1691 = vrot.lane.b32.xlu0 %v412, 40
        %v1692 = vpop.permute.xlu0 %1691
        %v1695 = vsel %vm420, %v1686, 0
        %1697 = vmatprep.subr.mxu0 0.0
        %1698 = vmatpush1.msra.mxu0 %v1692
        %1699 = vmatprep.subr.mxu0 0.0
        %1700 = vmatpush1.msra.mxu0 0.0
        %1701 = vmatprep.subr.mxu0 0.0
        %1702 = vmatpush1.msra.mxu0 0.0
        %1703 = vmatprep.subr.mxu0 0.0
        %1704 = vmatpush1.msra.mxu0 0.0
        %1705 = vmatprep.subr.mxu0 0.0
        %1706 = vmatpush1.msra.mxu0 0.0
        %1707 = vmatprep.subr.mxu0 0.0
        %1708 = vmatpush1.msra.mxu0 0.0
        %1709 = vmatprep.subr.mxu0 0.0
        %1710 = vmatpush1.msra.mxu0 0.0
        %1711 = vmatprep.subr.mxu0 0.0
        %1712 = vmatpush1.msra.mxu0 0.0
        %1713 = vmatprep.subr.mxu0 0.0
        %1714 = vmatpush1.msra.mxu0 0.0
        %1715 = vmatprep.subr.mxu0 0.0
        %1716 = vmatpush1.msra.mxu0 0.0
        %1717 = vmatprep.subr.mxu0 0.0
        %1718 = vmatpush1.msra.mxu0 0.0
        %1719 = vmatprep.subr.mxu0 0.0
        %1720 = vmatpush1.msra.mxu0 0.0
        %1721 = vmatprep.subr.mxu0 0.0
        %1722 = vmatpush1.msra.mxu0 0.0
        %1723 = vmatprep.subr.mxu0 0.0
        %1724 = vmatpush1.msra.mxu0 0.0
        %1725 = vmatprep.subr.mxu0 0.0
        %1726 = vmatpush1.msra.mxu0 0.0
        %1727 = vmatprep.subr.mxu0 0.0
        %1728 = vmatpush1.msra.mxu0 0.0
        %1729 = vmatprep.subr.mxu0 0.0
        %1730 = vmatpush1.msra.mxu0 0.0
        %1731 = vmatprep.subr.mxu0 0.0
        %1732 = vmatpush1.msra.mxu0 0.0
        %1733 = vmatprep.subr.mxu0 0.0
        %1734 = vmatpush1.msra.mxu0 0.0
        %1735 = vmatprep.subr.mxu0 0.0
        %1736 = vmatpush1.msra.mxu0 0.0
        %1737 = vmatprep.subr.mxu0 0.0
        %1738 = vmatpush1.msra.mxu0 0.0
        %1739 = vmatprep.subr.mxu0 0.0
        %1740 = vmatpush1.msra.mxu0 0.0
        %1741 = vmatprep.subr.mxu0 0.0
        %1742 = vmatpush1.msra.mxu0 0.0
        %1743 = vmatprep.subr.mxu0 0.0
        %1744 = vmatpush1.msra.mxu0 0.0
        %1745 = vmatprep.subr.mxu0 0.0
        %1746 = vmatpush1.msra.mxu0 0.0
        %1747 = vmatprep.subr.mxu0 0.0
        %1748 = vmatpush1.msra.mxu0 0.0
        %1749 = vmatprep.subr.mxu0 0.0
        %1750 = vmatpush1.msra.mxu0 0.0
        %1751 = vmatprep.subr.mxu0 0.0
        %1752 = vmatpush1.msra.mxu0 0.0
        %1753 = vmatprep.subr.mxu0 0.0
        %1754 = vmatpush1.msra.mxu0 0.0
        %1755 = vmatprep.subr.mxu0 0.0
        %1756 = vmatpush1.msra.mxu0 0.0
        %1757 = vmatprep.subr.mxu0 0.0
        %1758 = vmatpush1.msra.mxu0 0.0
        %1759 = vmatprep.subr.mxu0 0.0
        %1760 = vmatpush1.msra.mxu0 0.0
        %1761 = vmatprep.mubr.f32.mxu0 0.0
        %1762 = vmatmul.mubr.f32.gmra.mrb[0].mxu0 %v1695
        %v1763 = vpop.f32.mrb[0].mxu0
        %v1764 = vadd.f32 0.0, %v1763
        %v1765 = vpop.f32.mrb[0].mxu0
        %1766 = vdwg.mxu0
        %v1767 = vmul.f32 %v1764, %v1690
        %1769 = vrot.lane.b32.xlu0 %v1767, 24
        %v1770 = vpop.permute.xlu0 %1769
        %1772 = vst.msk [vmem:[#allocation2 + $0x8] sm:$0xff] %vm1095, %v1770
        %v1773 = vld [vmem:[#allocation2] sm:$0xff]
        %v1774 = vld [vmem:[#allocation2 + $0x8] sm:$0xff]
        %v1775 = vld [vmem:[%s284] sm:$0xff]
        %v1776 = vld [vmem:[%s284 + $0x8] sm:$0xff]
        %v1777 = vld [vmem:[%s284 + $0x10] sm:$0xff]
        %v1778 = vld [vmem:[%s284 + $0x18] sm:$0xff]
        %v1779 = vld [vmem:[%s325] sm:$0x1]
        %v1781 = vlaneseq
        %v1782 = vshrl.u32 %v1781, 7
        %v1783 = vsub.s32 0, %v1782
        %v1784 = vrot.slane %v1779, %v1783
        %v1787 = vsel %vm333, %v1773, 0
        %v1790 = vsel %vm333, %v1774, 0
        %1792 = vmatprep.subr.mxu0 0.0
        %1793 = vmatpush1.msra.mxu0 %v1775
        %1794 = vmatprep.subr.mxu0 0.0
        %1795 = vmatpush1.msra.mxu0 %v1776
        %1796 = vmatprep.subr.mxu0 0.0
        %1797 = vmatpush1.msra.mxu0 %v1777
        %1798 = vmatprep.subr.mxu0 0.0
        %1799 = vmatpush1.msra.mxu0 %v1778
        %1800 = vmatprep.subr.mxu0 0.0
        %1801 = vmatpush1.msra.mxu0 0.0
        %1802 = vmatprep.subr.mxu0 0.0
        %1803 = vmatpush1.msra.mxu0 0.0
        %1804 = vmatprep.subr.mxu0 0.0
        %1805 = vmatpush1.msra.mxu0 0.0
        %1806 = vmatprep.subr.mxu0 0.0
        %1807 = vmatpush1.msra.mxu0 0.0
        %1808 = vmatprep.subr.mxu0 0.0
        %1809 = vmatpush1.msra.mxu0 0.0
        %1810 = vmatprep.subr.mxu0 0.0
        %1811 = vmatpush1.msra.mxu0 0.0
        %1812 = vmatprep.subr.mxu0 0.0
        %1813 = vmatpush1.msra.mxu0 0.0
        %1814 = vmatprep.subr.mxu0 0.0
        %1815 = vmatpush1.msra.mxu0 0.0
        %1816 = vmatprep.subr.mxu0 0.0
        %1817 = vmatpush1.msra.mxu0 0.0
        %1818 = vmatprep.subr.mxu0 0.0
        %1819 = vmatpush1.msra.mxu0 0.0
        %1820 = vmatprep.subr.mxu0 0.0
        %1821 = vmatpush1.msra.mxu0 0.0
        %1822 = vmatprep.subr.mxu0 0.0
        %1823 = vmatpush1.msra.mxu0 0.0
        %1824 = vmatprep.subr.mxu0 0.0
        %1825 = vmatpush1.msra.mxu0 0.0
        %1826 = vmatprep.subr.mxu0 0.0
        %1827 = vmatpush1.msra.mxu0 0.0
        %1828 = vmatprep.subr.mxu0 0.0
        %1829 = vmatpush1.msra.mxu0 0.0
        %1830 = vmatprep.subr.mxu0 0.0
        %1831 = vmatpush1.msra.mxu0 0.0
        %1832 = vmatprep.subr.mxu0 0.0
        %1833 = vmatpush1.msra.mxu0 0.0
        %1834 = vmatprep.subr.mxu0 0.0
        %1835 = vmatpush1.msra.mxu0 0.0
        %1836 = vmatprep.subr.mxu0 0.0
        %1837 = vmatpush1.msra.mxu0 0.0
        %1838 = vmatprep.subr.mxu0 0.0
        %1839 = vmatpush1.msra.mxu0 0.0
        %1840 = vmatprep.subr.mxu0 0.0
        %1841 = vmatpush1.msra.mxu0 0.0
        %1842 = vmatprep.subr.mxu0 0.0
        %1843 = vmatpush1.msra.mxu0 0.0
        %1844 = vmatprep.subr.mxu0 0.0
        %1845 = vmatpush1.msra.mxu0 0.0
        %1846 = vmatprep.subr.mxu0 0.0
        %1847 = vmatpush1.msra.mxu0 0.0
        %1848 = vmatprep.subr.mxu0 0.0
        %1849 = vmatpush1.msra.mxu0 0.0
        %1850 = vmatprep.subr.mxu0 0.0
        %1851 = vmatpush1.msra.mxu0 0.0
        %1852 = vmatprep.subr.mxu0 0.0
        %1853 = vmatpush1.msra.mxu0 0.0
        %1854 = vmatprep.subr.mxu0 0.0
        %1855 = vmatpush1.msra.mxu0 0.0
        %1856 = vmatprep.mubr.f32.mxu0 0.0
        %1857 = vmatmul.mubr.f32.gmra.mrb[0].mxu0 %v1787
        %v1858 = vpop.f32.mrb[0].mxu0
        %v1859 = vadd.f32 %v1784, %v1858
        %v1860 = vpop.f32.mrb[0].mxu0
        %1861 = vmatprep.mubr.f32.mxu0 0.0
        %1862 = vmatmul.mubr.f32.gmra.mrb[0].mxu0 %v1790
        %v1863 = vpop.f32.mrb[0].mxu0
        %v1864 = vadd.f32 %v1784, %v1863
        %v1865 = vpop.f32.mrb[0].mxu0
        %1866 = vdwg.mxu0
        %1867 = vst.msk [vmem:[%s321] sm:$0xff] %vm333, %v1859
        %1868 = vst.msk [vmem:[%s321 + $0x8] sm:$0xff] %vm333, %v1864
        %s1869 = sand.u32 %s152, 1
        %s1870 = scalar_lea.sflag [#allocation5], %s1869
        %s1871 = sand.u32 %s152, 1
        %s1872 = smul.addr %s1871, 16
        %s1873 = scalar_lea.vmem [#allocation9], %s1872
        // Predicated region
        $region49: #{tpu_custom_call.1} parent=35 // pred_check
          %p1874 = pneg %p162
        $region50: #{tpu_custom_call.1} parent=35 // pred_check_branch
          %1876 = sbr.rel (%p1874) target = $region52
        $region51: #{tpu_custom_call.1} parent=35 // pred_region
          %s1877 = smul.u32 2, %s29
          %s1879 = ssub.s32 256, 256
          %1880 = vsyncadd %s1870, %s1879
          %s1881 = smul.addr %s28, 2
          %s1882 = sadd.s32 %s1877, %s1881
          %s1883 = smul.addr %s1882, 128
          %s1884 = scalar_lea.hbm %s4, %s1883
          %s1885 = sshll.u32 %s1873, 4
          %s1886 = int_to_ptr.vmem [resolvable:$true] %s1885
          %1891 = dma.vmem_to_hbm [thread:$0]  %s1886, 256, %s1884, %s1870, 128, 128, 8
        $region52: #{tpu_custom_call.1} parent=35 // pred_fallthru
          _
      $region36: #{tpu_custom_call.1} parent=5 // pred_fallthru
        _
      %p1892 = scmp.le.s32.totalorder 2, %s19
      // Predicated region
      $region53: #{tpu_custom_call.1} parent=5 // pred_check
        %p1893 = pneg %p1892
      $region54: #{tpu_custom_call.1} parent=5 // pred_check_branch
        %1895 = sbr.rel (%p1893) target = $region56
      $region55: #{tpu_custom_call.1} parent=5 // pred_region
        %s1896 = ssub.s32 %s19, 2
        // Predicated region
        $region57: #{tpu_custom_call.1} parent=55 // pred_check
          %p1897 = pneg %p168
        $region58: #{tpu_custom_call.1} parent=55 // pred_check_branch
          %1899 = sbr.rel (%p1897) target = $region60
        $region59: #{tpu_custom_call.1} parent=55 // pred_region
          %s1900 = sand.u32 %s153, 1
          %s1901 = scalar_lea.sflag [#allocation5], %s1900
          %s1902 = sand.u32 %s153, 1
          %s1903 = smul.addr %s1902, 16
          %s1904 = scalar_lea.vmem [#allocation9], %s1903
          %1905 = dma.done %s1901, 256
        $region60: #{tpu_custom_call.1} parent=55 // pred_fallthru
          _
      $region56: #{tpu_custom_call.1} parent=5 // pred_fallthru
        _
    $region6: #{tpu_custom_call.1} parent=1 // loop_footer
      %s23 = sadd.s32 1, %s19
    $region7: #{tpu_custom_call.1} parent=1 // loop_footer_branch
      %18 = sbr.rel target = $region3
    $region8: #{tpu_custom_call.1} parent=1 // loop_exit
      _
    %1906 = vsyncpa [#allocation4], 1
    %s1907 = scalar_lea.sflag [#allocation4], 1
    %1908 = vsyncpa %s1907, 1
    %1909 = vsyncpa [#allocation7], 1
    %s1910 = scalar_lea.sflag [#allocation7], 1
    %1911 = vsyncpa %s1910, 1
    %1912 = vsyncpa [#allocation5], 1
    %s1913 = scalar_lea.sflag [#allocation5], 1
    %1914 = vsyncpa %s1913, 1

</llo_original>
